<compile_context>
chip_gen: v6e
topology: v6e:2x2x1
jax: 0.10.0
libtpu: 0.0.40
codegen_flags: <defaults>
</compile_context>

<pallas_src>
import math

import jax
import jax.numpy as jnp
from jax import lax
from jax.experimental import pallas as pl
from jax.experimental.pallas import tpu as pltpu


# -----------------------------------------------------------------------------
# Kernel factory: GRU recurrence only (input projection GI is precomputed in XLA).
# Grid = (num_time_chunks,) — "arbitrary" (hidden state carried across chunks).
# Per grid step the kernel processes the forward direction's chunk k and the
# backward direction's chunk nchunks-1-k, interleaving both directions per step.
#
#   gi_d refs : [TT, B, 3H]   precomputed x@Wih^T + b_ih + b_hh[r,z] (gate order r,z,n)
#   whh_ref   : [D, H, 3H]    hidden weights (no bias)
#   bhn_ref   : [D, 1, H]     n-gate hidden bias (stays inside r * (...))
#   out_d refs: [TT, B, H]    per-timestep hidden state, per direction
#   h_scr     : VMEM [D,B,H] f32 recurrent state carried across time chunks
# -----------------------------------------------------------------------------
def _make_gru_kernel(num_dirs, TT, t_real, t_pad, H, unroll):
    need_mask = (t_pad != t_real)

    def body(gi_refs, whh_ref, bhn_ref, out_refs, h_scr):
        k = pl.program_id(0)
        B = h_scr.shape[1]

        @pl.when(k == 0)
        def _():
            h_scr[...] = jnp.zeros_like(h_scr)

        # Hoist weight loads and the n-gate bias broadcast out of the serial loop.
        whh = [whh_ref[d] for d in range(num_dirs)]                    # [H, 3H]
        bhn = [jnp.broadcast_to(bhn_ref[d], (B, H)) for d in range(num_dirs)]

        def step(s, carry):
            locs, gis, ghs, hps = [], [], [], []
            # Phase 1: issue both directions' hidden-side matmuls back-to-back (MXU),
            # bf16 operands with f32 accumulation; h stays f32 in scratch.
            for d in range(num_dirs):
                loc = s if d == 0 else TT - 1 - s
                hp = h_scr[d]                                          # [B, H] f32
                gh = jnp.dot(hp.astype(whh[d].dtype), whh[d],
                             preferred_element_type=jnp.float32)       # [B, 3H] f32
                locs.append(loc)
                gis.append(gi_refs[d][loc])                            # [B, 3H]
                ghs.append(gh)
                hps.append(hp)
            # Phase 2: activations + state update (VPU/EUP) for both directions.
            for d in range(num_dirs):
                gi, gh, hp = gis[d], ghs[d], hps[d]
                # PyTorch GRU cell, gate order (r, z, n); r/z hidden biases are
                # already folded into gi, only b_hn stays on the hidden side.
                r = jax.nn.sigmoid(gi[:, :H] + gh[:, :H])
                z = jax.nn.sigmoid(gi[:, H:2 * H] + gh[:, H:2 * H])
                n = jnp.tanh(gi[:, 2 * H:] + r * (gh[:, 2 * H:] + bhn[d]))
                h_new = (1.0 - z) * n + z * hp
                if need_mask:
                    # Padded timesteps carry the state through unchanged.
                    t_glob = k * TT + s if d == 0 else t_pad - 1 - (k * TT + s)
                    keep = (t_glob < t_real).astype(jnp.float32)
                    h_new = keep * h_new + (1.0 - keep) * hp
                h_scr[d] = h_new
                out_refs[d][locs[d]] = h_new.astype(out_refs[d].dtype)
            return carry

        lax.fori_loop(0, TT, step, 0, unroll=unroll)

    if num_dirs == 1:
        def kernel(gi0, whh_ref, bhn_ref, out0, h_scr):
            body((gi0,), whh_ref, bhn_ref, (out0,), h_scr)
    else:
        def kernel(gi0, gi1, whh_ref, bhn_ref, out0, out1, h_scr):
            body((gi0, gi1), whh_ref, bhn_ref, (out0, out1), h_scr)
    return kernel


def _gru_recurrence_pallas(gis, whh, bhn, *, out_dtype, time_chunk, vmem_budget):
    """gis: list (per direction) of [T, B, 3H] -> list of [T, B, H] hidden states."""
    num_dirs = len(gis)
    T, B, H3 = gis[0].shape
    H = H3 // 3

    gi_bytes = jnp.dtype(gis[0].dtype).itemsize
    out_bytes = jnp.dtype(out_dtype).itemsize
    whh_bytes = jnp.dtype(whh.dtype).itemsize

    # VMEM residency model: double-buffered GI + output blocks, (double-buffered)
    # weights, bias and the f32 state scratch.
    const_bytes = 2 * whh.size * whh_bytes + 2 * bhn.size * 4 + num_dirs * B * H * 4
    per_step_bytes = 2 * num_dirs * B * (3 * H * gi_bytes + H * out_bytes)
    tt_budget = max(1, (vmem_budget - const_bytes) // per_step_bytes)

    TT = int(max(1, min(T, time_chunk, tt_budget)))
    nchunks = -(-T // TT)
    t_pad = nchunks * TT
    if t_pad != T:
        gis = [jnp.pad(g, ((0, t_pad - T), (0, 0), (0, 0))) for g in gis]

    fwd_map = lambda k: (k, 0, 0)
    bwd_map = lambda k, n=nchunks: (n - 1 - k, 0, 0)
    dir_maps = [fwd_map, bwd_map]
    const_map = lambda k: (0, 0, 0)

    in_specs = [pl.BlockSpec((TT, B, H3), dir_maps[d]) for d in range(num_dirs)]
    in_specs += [pl.BlockSpec((num_dirs, H, H3), const_map),
                 pl.BlockSpec((num_dirs, 1, H), const_map)]
    out_specs = [pl.BlockSpec((TT, B, H), dir_maps[d]) for d in range(num_dirs)]
    out_shape = [jax.ShapeDtypeStruct((t_pad, B, H), out_dtype)
                 for _ in range(num_dirs)]

    vmem_need = const_bytes + per_step_bytes * TT
    vmem_limit = int(min(max(vmem_need * 5 // 4, 16 << 20), 100 << 20))

    kernel = _make_gru_kernel(num_dirs, TT, T, t_pad, H, unroll=min(TT, 4))

    outs = pl.pallas_call(
        kernel,
        out_shape=out_shape,
        grid_spec=pltpu.PrefetchScalarGridSpec(
            num_scalar_prefetch=0,
            grid=(nchunks,),
            in_specs=in_specs,
            out_specs=out_specs,
            scratch_shapes=[pltpu.VMEM((num_dirs, B, H), jnp.float32)]),
        compiler_params=pltpu.CompilerParams(
            dimension_semantics=("arbitrary",),
            vmem_limit_bytes=vmem_limit),
    )(*gis, whh, bhn)

    if not isinstance(outs, (list, tuple)):
        outs = [outs]
    outs = list(outs)
    if t_pad != T:
        outs = [o[:T] for o in outs]
    return outs


class BiLSTMTextEmbeddingPallas:
    """JAX/Pallas port of BiLSTMTextEmbedding (rnn_type='GRU', batch_first)."""

    def __init__(self, hidden_dim, embedding_dim, num_layers, dropout,
                 bidirectional=False, rnn_type="GRU", key=None,
                 time_chunk=64, dtype=jnp.bfloat16, vmem_budget=48 << 20):
        # TODO(synk): rnn_type='LSTM' variant not implemented (module defaults to GRU).
        assert rnn_type == "GRU", "only the GRU default is implemented"
        self.text_out_dim = hidden_dim
        self.num_hid = hidden_dim
        self.embedding_dim = embedding_dim
        self.num_layers = num_layers
        self.bidirectional = bidirectional
        self.num_dirs = 2 if bidirectional else 1
        self.dropout = dropout  # TODO(synk): training-mode inter-layer dropout not applied.
        self.time_chunk = time_chunk
        self.dtype = dtype            # GI / output / weight storage dtype (h stays f32)
        self.vmem_budget = vmem_budget

        if key is None:
            key = jax.random.PRNGKey(0)
        bound = 1.0 / math.sqrt(hidden_dim)   # PyTorch RNN default init
        H = hidden_dim
        self.params_f32 = []   # per layer: (wih [D,in,3H], whh [D,H,3H], bih [D,3H], bhh [D,3H])
        self.layers = []       # per layer: (wih_k, whh_k, gi_bias [D,3H] f32, bhn [D,1,H] f32)
        for layer in range(num_layers):
            in_dim = embedding_dim if layer == 0 else hidden_dim * self.num_dirs
            wih_d, whh_d, bih_d, bhh_d = [], [], [], []
            for _ in range(self.num_dirs):
                key, k1, k2, k3, k4 = jax.random.split(key, 5)
                w_ih = jax.random.uniform(k1, (3 * H, in_dim), jnp.float32, -bound, bound)
                w_hh = jax.random.uniform(k2, (3 * H, H), jnp.float32, -bound, bound)
                b_ih = jax.random.uniform(k3, (3 * H,), jnp.float32, -bound, bound)
                b_hh = jax.random.uniform(k4, (3 * H,), jnp.float32, -bound, bound)
                wih_d.append(w_ih.T)      # [in, 3H], gate order (r, z, n) along 3H
                whh_d.append(w_hh.T)      # [H, 3H]
                bih_d.append(b_ih)
                bhh_d.append(b_hh)
            wih = jnp.stack(wih_d)
            whh = jnp.stack(whh_d)
            bih = jnp.stack(bih_d)
            bhh = jnp.stack(bhh_d)
            self.params_f32.append((wih, whh, bih, bhh))
            # Fold b_hh's r/z thirds into the GI bias; keep only b_hn for the kernel.
            gi_bias = bih + jnp.concatenate(
                [bhh[:, :2 * H], jnp.zeros_like(bhh[:, 2 * H:])], axis=-1)
            bhn = bhh[:, 2 * H:].reshape(self.num_dirs, 1, H)
            self.layers.append((wih.astype(dtype), whh.astype(dtype), gi_bias, bhn))

    # ---- core recurrent encoder: returns per-direction final-layer outputs [T,B,H] ----
    def _encode_feats(self, x):
        feats = [jnp.transpose(x, (1, 0, 2)).astype(self.dtype)]   # time-major
        for (wih, whh, gi_bias, bhn) in self.layers:
            gis = []
            for d in range(self.num_dirs):
                # Input-side projection for all timesteps at once (lane-dense matmul,
                # off the serial critical path).  Summing per-direction features of
                # the previous layer avoids materializing a [T,B,D*H] concat.
                off, acc = 0, None
                for f in feats:
                    w = f.shape[-1]
                    p = jnp.einsum('tbe,eg->tbg', f, wih[d, off:off + w],
                                   preferred_element_type=jnp.float32)
                    acc = p if acc is None else acc + p
                    off += w
                gis.append((acc + gi_bias[d]).astype(self.dtype))
            feats = _gru_recurrence_pallas(
                gis, whh, bhn, out_dtype=self.dtype,
                time_chunk=self.time_chunk, vmem_budget=self.vmem_budget)
        return feats

    def forward(self, x):
        feats = self._encode_feats(x)
        T = x.shape[1]
        if self.bidirectional:
            return jnp.concatenate([f[T - 1] for f in feats], axis=-1)   # out[:, -1]
        return feats[0][T - 1]   # cat((out[:,-1,:H], empty backward slice))

    def forward_all(self, x):
        feats = self._encode_feats(x)
        out = jnp.concatenate(feats, axis=-1) if len(feats) > 1 else feats[0]
        return jnp.transpose(out, (1, 0, 2))   # batch_first [B, T, D*H]

    # ---- pure-JAX f32 reference (exact PyTorch GRU math) ----
    def _reference_feats(self, x):
        H = self.num_hid
        B = x.shape[0]
        seq = jnp.transpose(x, (1, 0, 2)).astype(jnp.float32)
        feats = None
        for (wih, whh, bih, bhh) in self.params_f32:
            outs = []
            for d in range(self.num_dirs):
                xs = seq if d == 0 else seq[::-1]

                def cell(h, xt, wih_d=wih[d], whh_d=whh[d], bih_d=bih[d], bhh_d=bhh[d]):
                    gi = xt @ wih_d + bih_d
                    gh = h @ whh_d + bhh_d
                    r = jax.nn.sigmoid(gi[:, :H] + gh[:, :H])
                    z = jax.nn.sigmoid(gi[:, H:2 * H] + gh[:, H:2 * H])
                    n = jnp.tanh(gi[:, 2 * H:] + r * gh[:, 2 * H:])
                    hn = (1.0 - z) * n + z * h
                    return hn, hn

                _, o = lax.scan(cell, jnp.zeros((B, H), jnp.float32), xs)
                if d == 1:
                    o = o[::-1]
                outs.append(o)
            seq = jnp.concatenate(outs, axis=-1) if len(outs) > 1 else outs[0]
            feats = outs
        return feats

    def forward_reference(self, x):
        feats = self._reference_feats(x)
        T = x.shape[1]
        if self.bidirectional:
            return jnp.concatenate([f[T - 1] for f in feats], axis=-1)
        return feats[0][T - 1]

    def forward_all_reference(self, x):
        feats = self._reference_feats(x)
        out = jnp.concatenate(feats, axis=-1) if len(feats) > 1 else feats[0]
        return jnp.transpose(out, (1, 0, 2))


if __name__ == "__main__":
    # B>=8 sublanes, H multiple of 128 (lane-dense), T=10 with time_chunk=4 exercises
    # the pad-to-multiple-of-TT + per-step masking path.
    B, T, E, H = 8, 10, 32, 128

    root = jax.random.PRNGKey(0)
    k_params, k_input = jax.random.split(root)
    x = jax.random.normal(k_input, (B, T, E), dtype=jnp.float32)   # batch_first

    # f32 model: tight parity against the pure-JAX reference.
    model = BiLSTMTextEmbeddingPallas(
        hidden_dim=H, embedding_dim=E, num_layers=2, dropout=0.0,
        bidirectional=True, rnn_type="GRU", key=k_params,
        time_chunk=4, dtype=jnp.float32)

    out = jax.block_until_ready(model.forward(x))
    assert out.shape == (B, 2 * H), out.shape
    ref = model.forward_reference(x)
    assert jnp.allclose(out, ref, atol=1e-4, rtol=1e-4), (
        float(jnp.max(jnp.abs(out - ref))))

    out_all = jax.block_until_ready(model.forward_all(x))
    assert out_all.shape == (B, T, 2 * H), out_all.shape
    ref_all = model.forward_all_reference(x)
    assert jnp.allclose(out_all, ref_all, atol=1e-4, rtol=1e-4), (
        float(jnp.max(jnp.abs(out_all - ref_all))))

    # bf16 model (production dtype: bf16 GI/outputs/weights, f32 state + accumulation).
    model_bf16 = BiLSTMTextEmbeddingPallas(
        hidden_dim=H, embedding_dim=E, num_layers=2, dropout=0.0,
        bidirectional=True, rnn_type="GRU", key=k_params,
        time_chunk=8, dtype=jnp.bfloat16)
    out_bf = jax.block_until_ready(model_bf16.forward(x)).astype(jnp.float32)
    ref_bf = model_bf16.forward_reference(x)
    assert out_bf.shape == (B, 2 * H), out_bf.shape
    assert jnp.allclose(out_bf, ref_bf, atol=1e-1, rtol=1e-1), (
        float(jnp.max(jnp.abs(out_bf - ref_bf))))

    # Unidirectional path (single direction, single chunk).
    model_uni = BiLSTMTextEmbeddingPallas(
        hidden_dim=H, embedding_dim=E, num_layers=1, dropout=0.0,
        bidirectional=False, rnn_type="GRU", key=k_params,
        time_chunk=16, dtype=jnp.float32)
    out_uni = jax.block_until_ready(model_uni.forward(x))
    assert out_uni.shape == (B, H), out_uni.shape
    ref_uni = model_uni.forward_reference(x)
    assert jnp.allclose(out_uni, ref_uni, atol=1e-4, rtol=1e-4), (
        float(jnp.max(jnp.abs(out_uni - ref_uni))))

    print("KERNEL_OK")
</pallas_src>

<mosaic_0001>
module attributes {stable_mosaic.version = 11 : i64} {
  func.func @kernel(%arg0: i32, %arg1: memref<4x8x384xf32, #tpu.memory_space<vmem>>, %arg2: memref<4x8x384xf32, #tpu.memory_space<vmem>>, %arg3: memref<2x128x384xf32, #tpu.memory_space<vmem>>, %arg4: memref<2x1x128xf32, #tpu.memory_space<vmem>>, %arg5: memref<4x8x128xf32, #tpu.memory_space<vmem>>, %arg6: memref<4x8x128xf32, #tpu.memory_space<vmem>>, %arg7: memref<2x8x128xf32, #tpu.memory_space<vmem>>) attributes {dimension_semantics = [#tpu.dimension_semantics<arbitrary>], iteration_bounds = array<i64: 3>, scalar_prefetch = 0 : i64, scratch_operands = 1 : i64, tpu.core_type = #tpu.core_type<tc>, window_params = [{transform_indices = @transform_0, window_bounds = array<i64: 4, 8, 384>}, {transform_indices = @transform_1, window_bounds = array<i64: 4, 8, 384>}, {pipeline_mode = #tpu.pipeline_mode<synchronous>, transform_indices = @transform_2, window_bounds = array<i64: 2, 128, 384>}, {pipeline_mode = #tpu.pipeline_mode<synchronous>, transform_indices = @transform_3, window_bounds = array<i64: 2, 1, 128>}, {transform_indices = @transform_4, window_bounds = array<i64: 4, 8, 128>}, {transform_indices = @transform_5, window_bounds = array<i64: 4, 8, 128>}]} {
    %c0_i32 = arith.constant 0 : i32
    %0 = arith.cmpi eq, %arg0, %c0_i32 : i32
    %1 = arith.extui %0 : i1 to i32
    %c0_i32_0 = arith.constant 0 : i32
    %2 = arith.cmpi ne, %1, %c0_i32_0 : i32
    scf.if %2 {
      %cst_153 = arith.constant 0.000000e+00 : f32
      %431 = vector.broadcast %cst_153 : f32 to vector<2x8x128xf32>
      %c0_154 = arith.constant 0 : index
      %c0_155 = arith.constant 0 : index
      %c0_156 = arith.constant 0 : index
      %432 = vector.load %arg7[%c0_154, %c0_155, %c0_156] : memref<2x8x128xf32, #tpu.memory_space<vmem>>, vector<2x8x128xf32>
      tpu.vector_store %arg7[%c0_154, %c0_155, %c0_156], %431 {strides = array<i32>} : memref<2x8x128xf32, #tpu.memory_space<vmem>>, vector<2x8x128xf32>,
    } else {
    }
    %c0 = arith.constant 0 : index
    %c0_1 = arith.constant 0 : index
    %c0_2 = arith.constant 0 : index
    %3 = vector.load %arg3[%c0, %c0_1, %c0_2] : memref<2x128x384xf32, #tpu.memory_space<vmem>>, vector<1x128x384xf32>
    %4 = vector.shape_cast %3 : vector<1x128x384xf32> to vector<128x384xf32>
    %c1 = arith.constant 1 : index
    %c0_3 = arith.constant 0 : index
    %c0_4 = arith.constant 0 : index
    %5 = vector.load %arg3[%c1, %c0_3, %c0_4] : memref<2x128x384xf32, #tpu.memory_space<vmem>>, vector<1x128x384xf32>
    %6 = vector.shape_cast %5 : vector<1x128x384xf32> to vector<128x384xf32>
    %c0_5 = arith.constant 0 : index
    %c0_6 = arith.constant 0 : index
    %c0_7 = arith.constant 0 : index
    %7 = vector.load %arg4[%c0_5, %c0_6, %c0_7] : memref<2x1x128xf32, #tpu.memory_space<vmem>>, vector<1x1x128xf32>
    %8 = vector.shape_cast %7 : vector<1x1x128xf32> to vector<1x128xf32>
    %9 = vector.shape_cast %8 : vector<1x128xf32> to vector<1x128xf32>
    %10 = vector.broadcast %9 : vector<1x128xf32> to vector<8x128xf32>
    %c1_8 = arith.constant 1 : index
    %c0_9 = arith.constant 0 : index
    %c0_10 = arith.constant 0 : index
    %11 = vector.load %arg4[%c1_8, %c0_9, %c0_10] : memref<2x1x128xf32, #tpu.memory_space<vmem>>, vector<1x1x128xf32>
    %12 = vector.shape_cast %11 : vector<1x1x128xf32> to vector<1x128xf32>
    %13 = vector.shape_cast %12 : vector<1x128xf32> to vector<1x128xf32>
    %14 = vector.broadcast %13 : vector<1x128xf32> to vector<8x128xf32>
    %c0_i32_11 = arith.constant 0 : i32
    %c0_12 = arith.constant 0 : index
    %c0_13 = arith.constant 0 : index
    %c0_14 = arith.constant 0 : index
    %15 = vector.load %arg7[%c0_12, %c0_13, %c0_14] : memref<2x8x128xf32, #tpu.memory_space<vmem>>, vector<1x8x128xf32>
    %16 = vector.shape_cast %15 : vector<1x8x128xf32> to vector<8x128xf32>
    %cst = arith.constant dense<0.000000e+00> : vector<8x384xf32>
    %17 = tpu.matmul %16, %4, %cst {dimension_numbers = #tpu.dot_dimension_numbers<[1], [0], [0], [1], [0, 0, 1, 1], [], []>} : vector<8x128xf32>, vector<128x384xf32>, vector<8x384xf32> -> vector<8x384xf32>
    %18 = arith.index_cast %c0_i32_11 : i32 to index
    %c0_15 = arith.constant 0 : index
    %c0_16 = arith.constant 0 : index
    %19 = vector.load %arg1[%18, %c0_15, %c0_16] : memref<4x8x384xf32, #tpu.memory_space<vmem>>, vector<1x8x384xf32>
    %20 = vector.shape_cast %19 : vector<1x8x384xf32> to vector<8x384xf32>
    %c3_i32 = arith.constant 3 : i32
    %21 = arith.subi %c3_i32, %c0_i32_11 : i32
    %c1_17 = arith.constant 1 : index
    %c0_18 = arith.constant 0 : index
    %c0_19 = arith.constant 0 : index
    %22 = vector.load %arg7[%c1_17, %c0_18, %c0_19] : memref<2x8x128xf32, #tpu.memory_space<vmem>>, vector<1x8x128xf32>
    %23 = vector.shape_cast %22 : vector<1x8x128xf32> to vector<8x128xf32>
    %cst_20 = arith.constant dense<0.000000e+00> : vector<8x384xf32>
    %24 = tpu.matmul %23, %6, %cst_20 {dimension_numbers = #tpu.dot_dimension_numbers<[1], [0], [0], [1], [0, 0, 1, 1], [], []>} : vector<8x128xf32>, vector<128x384xf32>, vector<8x384xf32> -> vector<8x384xf32>
    %25 = arith.index_cast %21 : i32 to index
    %c0_21 = arith.constant 0 : index
    %c0_22 = arith.constant 0 : index
    %26 = vector.load %arg2[%25, %c0_21, %c0_22] : memref<4x8x384xf32, #tpu.memory_space<vmem>>, vector<1x8x384xf32>
    %27 = vector.shape_cast %26 : vector<1x8x384xf32> to vector<8x384xf32>
    %28 = vector.extract_strided_slice %20 {offsets = [0, 0], sizes = [8, 128], strides = [1, 1]} : vector<8x384xf32> to vector<8x128xf32>
    %29 = vector.extract_strided_slice %17 {offsets = [0, 0], sizes = [8, 128], strides = [1, 1]} : vector<8x384xf32> to vector<8x128xf32>
    %30 = arith.addf %28, %29 : vector<8x128xf32>
    %31 = arith.negf %30 : vector<8x128xf32>
    %32 = math.exp %31 : vector<8x128xf32>
    %cst_23 = arith.constant 1.000000e+00 : f32
    %33 = vector.broadcast %cst_23 : f32 to vector<8x128xf32>
    %34 = arith.addf %33, %32 : vector<8x128xf32>
    %35 = arith.divf %33, %34 : vector<8x128xf32>
    %36 = vector.extract_strided_slice %20 {offsets = [0, 128], sizes = [8, 128], strides = [1, 1]} : vector<8x384xf32> to vector<8x128xf32>
    %37 = vector.extract_strided_slice %17 {offsets = [0, 128], sizes = [8, 128], strides = [1, 1]} : vector<8x384xf32> to vector<8x128xf32>
    %38 = arith.addf %36, %37 : vector<8x128xf32>
    %39 = arith.negf %38 : vector<8x128xf32>
    %40 = math.exp %39 : vector<8x128xf32>
    %cst_24 = arith.constant 1.000000e+00 : f32
    %41 = vector.broadcast %cst_24 : f32 to vector<8x128xf32>
    %42 = arith.addf %41, %40 : vector<8x128xf32>
    %43 = arith.divf %41, %42 : vector<8x128xf32>
    %44 = vector.extract_strided_slice %20 {offsets = [0, 256], sizes = [8, 128], strides = [1, 1]} : vector<8x384xf32> to vector<8x128xf32>
    %45 = vector.extract_strided_slice %17 {offsets = [0, 256], sizes = [8, 128], strides = [1, 1]} : vector<8x384xf32> to vector<8x128xf32>
    %46 = arith.addf %45, %10 : vector<8x128xf32>
    %47 = arith.mulf %35, %46 : vector<8x128xf32>
    %48 = arith.addf %44, %47 : vector<8x128xf32>
    %49 = math.tanh %48 : vector<8x128xf32>
    %cst_25 = arith.constant 1.000000e+00 : f32
    %50 = vector.broadcast %cst_25 : f32 to vector<8x128xf32>
    %51 = arith.subf %50, %43 : vector<8x128xf32>
    %52 = arith.mulf %51, %49 : vector<8x128xf32>
    %53 = arith.mulf %43, %16 : vector<8x128xf32>
    %54 = arith.addf %52, %53 : vector<8x128xf32>
    %c4_i32 = arith.constant 4 : i32
    %55 = arith.muli %arg0, %c4_i32 : i32
    %56 = arith.addi %55, %c0_i32_11 : i32
    %c10_i32 = arith.constant 10 : i32
    %57 = arith.cmpi slt, %56, %c10_i32 : i32
    %58 = arith.extui %57 : i1 to i32
    %59 = arith.sitofp %58 : i32 to f32
    %60 = vector.broadcast %59 : f32 to vector<8x128xf32>
    %61 = arith.mulf %60, %54 : vector<8x128xf32>
    %cst_26 = arith.constant 1.000000e+00 : f32
    %62 = arith.subf %cst_26, %59 : f32
    %63 = vector.broadcast %62 : f32 to vector<8x128xf32>
    %64 = arith.mulf %63, %16 : vector<8x128xf32>
    %65 = arith.addf %61, %64 : vector<8x128xf32>
    %c0_27 = arith.constant 0 : index
    %c0_28 = arith.constant 0 : index
    %c0_29 = arith.constant 0 : index
    %66 = vector.load %arg7[%c0_27, %c0_28, %c0_29] : memref<2x8x128xf32, #tpu.memory_space<vmem>>, vector<1x8x128xf32>
    %67 = vector.shape_cast %66 : vector<1x8x128xf32> to vector<8x128xf32>
    %68 = vector.shape_cast %65 : vector<8x128xf32> to vector<1x8x128xf32>
    tpu.vector_store %arg7[%c0_27, %c0_28, %c0_29], %68 {strides = array<i32>} : memref<2x8x128xf32, #tpu.memory_space<vmem>>, vector<1x8x128xf32>,
    %69 = arith.index_cast %c0_i32_11 : i32 to index
    %c0_30 = arith.constant 0 : index
    %c0_31 = arith.constant 0 : index
    %70 = vector.load %arg5[%69, %c0_30, %c0_31] : memref<4x8x128xf32, #tpu.memory_space<vmem>>, vector<1x8x128xf32>
    %71 = vector.shape_cast %70 : vector<1x8x128xf32> to vector<8x128xf32>
    %72 = vector.shape_cast %65 : vector<8x128xf32> to vector<1x8x128xf32>
    tpu.vector_store %arg5[%69, %c0_30, %c0_31], %72 {strides = array<i32>} : memref<4x8x128xf32, #tpu.memory_space<vmem>>, vector<1x8x128xf32>,
    %73 = vector.extract_strided_slice %27 {offsets = [0, 0], sizes = [8, 128], strides = [1, 1]} : vector<8x384xf32> to vector<8x128xf32>
    %74 = vector.extract_strided_slice %24 {offsets = [0, 0], sizes = [8, 128], strides = [1, 1]} : vector<8x384xf32> to vector<8x128xf32>
    %75 = arith.addf %73, %74 : vector<8x128xf32>
    %76 = arith.negf %75 : vector<8x128xf32>
    %77 = math.exp %76 : vector<8x128xf32>
    %cst_32 = arith.constant 1.000000e+00 : f32
    %78 = vector.broadcast %cst_32 : f32 to vector<8x128xf32>
    %79 = arith.addf %78, %77 : vector<8x128xf32>
    %80 = arith.divf %78, %79 : vector<8x128xf32>
    %81 = vector.extract_strided_slice %27 {offsets = [0, 128], sizes = [8, 128], strides = [1, 1]} : vector<8x384xf32> to vector<8x128xf32>
    %82 = vector.extract_strided_slice %24 {offsets = [0, 128], sizes = [8, 128], strides = [1, 1]} : vector<8x384xf32> to vector<8x128xf32>
    %83 = arith.addf %81, %82 : vector<8x128xf32>
    %84 = arith.negf %83 : vector<8x128xf32>
    %85 = math.exp %84 : vector<8x128xf32>
    %cst_33 = arith.constant 1.000000e+00 : f32
    %86 = vector.broadcast %cst_33 : f32 to vector<8x128xf32>
    %87 = arith.addf %86, %85 : vector<8x128xf32>
    %88 = arith.divf %86, %87 : vector<8x128xf32>
    %89 = vector.extract_strided_slice %27 {offsets = [0, 256], sizes = [8, 128], strides = [1, 1]} : vector<8x384xf32> to vector<8x128xf32>
    %90 = vector.extract_strided_slice %24 {offsets = [0, 256], sizes = [8, 128], strides = [1, 1]} : vector<8x384xf32> to vector<8x128xf32>
    %91 = arith.addf %90, %14 : vector<8x128xf32>
    %92 = arith.mulf %80, %91 : vector<8x128xf32>
    %93 = arith.addf %89, %92 : vector<8x128xf32>
    %94 = math.tanh %93 : vector<8x128xf32>
    %cst_34 = arith.constant 1.000000e+00 : f32
    %95 = vector.broadcast %cst_34 : f32 to vector<8x128xf32>
    %96 = arith.subf %95, %88 : vector<8x128xf32>
    %97 = arith.mulf %96, %94 : vector<8x128xf32>
    %98 = arith.mulf %88, %23 : vector<8x128xf32>
    %99 = arith.addf %97, %98 : vector<8x128xf32>
    %c4_i32_35 = arith.constant 4 : i32
    %100 = arith.muli %arg0, %c4_i32_35 : i32
    %101 = arith.addi %100, %c0_i32_11 : i32
    %c11_i32 = arith.constant 11 : i32
    %102 = arith.subi %c11_i32, %101 : i32
    %c10_i32_36 = arith.constant 10 : i32
    %103 = arith.cmpi slt, %102, %c10_i32_36 : i32
    %104 = arith.extui %103 : i1 to i32
    %105 = arith.sitofp %104 : i32 to f32
    %106 = vector.broadcast %105 : f32 to vector<8x128xf32>
    %107 = arith.mulf %106, %99 : vector<8x128xf32>
    %cst_37 = arith.constant 1.000000e+00 : f32
    %108 = arith.subf %cst_37, %105 : f32
    %109 = vector.broadcast %108 : f32 to vector<8x128xf32>
    %110 = arith.mulf %109, %23 : vector<8x128xf32>
    %111 = arith.addf %107, %110 : vector<8x128xf32>
    %c1_38 = arith.constant 1 : index
    %c0_39 = arith.constant 0 : index
    %c0_40 = arith.constant 0 : index
    %112 = vector.load %arg7[%c1_38, %c0_39, %c0_40] : memref<2x8x128xf32, #tpu.memory_space<vmem>>, vector<1x8x128xf32>
    %113 = vector.shape_cast %112 : vector<1x8x128xf32> to vector<8x128xf32>
    %114 = vector.shape_cast %111 : vector<8x128xf32> to vector<1x8x128xf32>
    tpu.vector_store %arg7[%c1_38, %c0_39, %c0_40], %114 {strides = array<i32>} : memref<2x8x128xf32, #tpu.memory_space<vmem>>, vector<1x8x128xf32>,
    %115 = arith.index_cast %21 : i32 to index
    %c0_41 = arith.constant 0 : index
    %c0_42 = arith.constant 0 : index
    %116 = vector.load %arg6[%115, %c0_41, %c0_42] : memref<4x8x128xf32, #tpu.memory_space<vmem>>, vector<1x8x128xf32>
    %117 = vector.shape_cast %116 : vector<1x8x128xf32> to vector<8x128xf32>
    %118 = vector.shape_cast %111 : vector<8x128xf32> to vector<1x8x128xf32>
    tpu.vector_store %arg6[%115, %c0_41, %c0_42], %118 {strides = array<i32>} : memref<4x8x128xf32, #tpu.memory_space<vmem>>, vector<1x8x128xf32>,
    %c1_i32 = arith.constant 1 : i32
    %c0_43 = arith.constant 0 : index
    %c0_44 = arith.constant 0 : index
    %c0_45 = arith.constant 0 : index
    %119 = vector.load %arg7[%c0_43, %c0_44, %c0_45] : memref<2x8x128xf32, #tpu.memory_space<vmem>>, vector<1x8x128xf32>
    %120 = vector.shape_cast %119 : vector<1x8x128xf32> to vector<8x128xf32>
    %cst_46 = arith.constant dense<0.000000e+00> : vector<8x384xf32>
    %121 = tpu.matmul %120, %4, %cst_46 {dimension_numbers = #tpu.dot_dimension_numbers<[1], [0], [0], [1], [0, 0, 1, 1], [], []>} : vector<8x128xf32>, vector<128x384xf32>, vector<8x384xf32> -> vector<8x384xf32>
    %122 = arith.index_cast %c1_i32 : i32 to index
    %c0_47 = arith.constant 0 : index
    %c0_48 = arith.constant 0 : index
    %123 = vector.load %arg1[%122, %c0_47, %c0_48] : memref<4x8x384xf32, #tpu.memory_space<vmem>>, vector<1x8x384xf32>
    %124 = vector.shape_cast %123 : vector<1x8x384xf32> to vector<8x384xf32>
    %c3_i32_49 = arith.constant 3 : i32
    %125 = arith.subi %c3_i32_49, %c1_i32 : i32
    %c1_50 = arith.constant 1 : index
    %c0_51 = arith.constant 0 : index
    %c0_52 = arith.constant 0 : index
    %126 = vector.load %arg7[%c1_50, %c0_51, %c0_52] : memref<2x8x128xf32, #tpu.memory_space<vmem>>, vector<1x8x128xf32>
    %127 = vector.shape_cast %126 : vector<1x8x128xf32> to vector<8x128xf32>
    %cst_53 = arith.constant dense<0.000000e+00> : vector<8x384xf32>
    %128 = tpu.matmul %127, %6, %cst_53 {dimension_numbers = #tpu.dot_dimension_numbers<[1], [0], [0], [1], [0, 0, 1, 1], [], []>} : vector<8x128xf32>, vector<128x384xf32>, vector<8x384xf32> -> vector<8x384xf32>
    %129 = arith.index_cast %125 : i32 to index
    %c0_54 = arith.constant 0 : index
    %c0_55 = arith.constant 0 : index
    %130 = vector.load %arg2[%129, %c0_54, %c0_55] : memref<4x8x384xf32, #tpu.memory_space<vmem>>, vector<1x8x384xf32>
    %131 = vector.shape_cast %130 : vector<1x8x384xf32> to vector<8x384xf32>
    %132 = vector.extract_strided_slice %124 {offsets = [0, 0], sizes = [8, 128], strides = [1, 1]} : vector<8x384xf32> to vector<8x128xf32>
    %133 = vector.extract_strided_slice %121 {offsets = [0, 0], sizes = [8, 128], strides = [1, 1]} : vector<8x384xf32> to vector<8x128xf32>
    %134 = arith.addf %132, %133 : vector<8x128xf32>
    %135 = arith.negf %134 : vector<8x128xf32>
    %136 = math.exp %135 : vector<8x128xf32>
    %cst_56 = arith.constant 1.000000e+00 : f32
    %137 = vector.broadcast %cst_56 : f32 to vector<8x128xf32>
    %138 = arith.addf %137, %136 : vector<8x128xf32>
    %139 = arith.divf %137, %138 : vector<8x128xf32>
    %140 = vector.extract_strided_slice %124 {offsets = [0, 128], sizes = [8, 128], strides = [1, 1]} : vector<8x384xf32> to vector<8x128xf32>
    %141 = vector.extract_strided_slice %121 {offsets = [0, 128], sizes = [8, 128], strides = [1, 1]} : vector<8x384xf32> to vector<8x128xf32>
    %142 = arith.addf %140, %141 : vector<8x128xf32>
    %143 = arith.negf %142 : vector<8x128xf32>
    %144 = math.exp %143 : vector<8x128xf32>
    %cst_57 = arith.constant 1.000000e+00 : f32
    %145 = vector.broadcast %cst_57 : f32 to vector<8x128xf32>
    %146 = arith.addf %145, %144 : vector<8x128xf32>
    %147 = arith.divf %145, %146 : vector<8x128xf32>
    %148 = vector.extract_strided_slice %124 {offsets = [0, 256], sizes = [8, 128], strides = [1, 1]} : vector<8x384xf32> to vector<8x128xf32>
    %149 = vector.extract_strided_slice %121 {offsets = [0, 256], sizes = [8, 128], strides = [1, 1]} : vector<8x384xf32> to vector<8x128xf32>
    %150 = arith.addf %149, %10 : vector<8x128xf32>
    %151 = arith.mulf %139, %150 : vector<8x128xf32>
    %152 = arith.addf %148, %151 : vector<8x128xf32>
    %153 = math.tanh %152 : vector<8x128xf32>
    %cst_58 = arith.constant 1.000000e+00 : f32
    %154 = vector.broadcast %cst_58 : f32 to vector<8x128xf32>
    %155 = arith.subf %154, %147 : vector<8x128xf32>
    %156 = arith.mulf %155, %153 : vector<8x128xf32>
    %157 = arith.mulf %147, %120 : vector<8x128xf32>
    %158 = arith.addf %156, %157 : vector<8x128xf32>
    %c4_i32_59 = arith.constant 4 : i32
    %159 = arith.muli %arg0, %c4_i32_59 : i32
    %160 = arith.addi %159, %c1_i32 : i32
    %c10_i32_60 = arith.constant 10 : i32
    %161 = arith.cmpi slt, %160, %c10_i32_60 : i32
    %162 = arith.extui %161 : i1 to i32
    %163 = arith.sitofp %162 : i32 to f32
    %164 = vector.broadcast %163 : f32 to vector<8x128xf32>
    %165 = arith.mulf %164, %158 : vector<8x128xf32>
    %cst_61 = arith.constant 1.000000e+00 : f32
    %166 = arith.subf %cst_61, %163 : f32
    %167 = vector.broadcast %166 : f32 to vector<8x128xf32>
    %168 = arith.mulf %167, %120 : vector<8x128xf32>
    %169 = arith.addf %165, %168 : vector<8x128xf32>
    %c0_62 = arith.constant 0 : index
    %c0_63 = arith.constant 0 : index
    %c0_64 = arith.constant 0 : index
    %170 = vector.load %arg7[%c0_62, %c0_63, %c0_64] : memref<2x8x128xf32, #tpu.memory_space<vmem>>, vector<1x8x128xf32>
    %171 = vector.shape_cast %170 : vector<1x8x128xf32> to vector<8x128xf32>
    %172 = vector.shape_cast %169 : vector<8x128xf32> to vector<1x8x128xf32>
    tpu.vector_store %arg7[%c0_62, %c0_63, %c0_64], %172 {strides = array<i32>} : memref<2x8x128xf32, #tpu.memory_space<vmem>>, vector<1x8x128xf32>,
    %173 = arith.index_cast %c1_i32 : i32 to index
    %c0_65 = arith.constant 0 : index
    %c0_66 = arith.constant 0 : index
    %174 = vector.load %arg5[%173, %c0_65, %c0_66] : memref<4x8x128xf32, #tpu.memory_space<vmem>>, vector<1x8x128xf32>
    %175 = vector.shape_cast %174 : vector<1x8x128xf32> to vector<8x128xf32>
    %176 = vector.shape_cast %169 : vector<8x128xf32> to vector<1x8x128xf32>
    tpu.vector_store %arg5[%173, %c0_65, %c0_66], %176 {strides = array<i32>} : memref<4x8x128xf32, #tpu.memory_space<vmem>>, vector<1x8x128xf32>,
    %177 = vector.extract_strided_slice %131 {offsets = [0, 0], sizes = [8, 128], strides = [1, 1]} : vector<8x384xf32> to vector<8x128xf32>
    %178 = vector.extract_strided_slice %128 {offsets = [0, 0], sizes = [8, 128], strides = [1, 1]} : vector<8x384xf32> to vector<8x128xf32>
    %179 = arith.addf %177, %178 : vector<8x128xf32>
    %180 = arith.negf %179 : vector<8x128xf32>
    %181 = math.exp %180 : vector<8x128xf32>
    %cst_67 = arith.constant 1.000000e+00 : f32
    %182 = vector.broadcast %cst_67 : f32 to vector<8x128xf32>
    %183 = arith.addf %182, %181 : vector<8x128xf32>
    %184 = arith.divf %182, %183 : vector<8x128xf32>
    %185 = vector.extract_strided_slice %131 {offsets = [0, 128], sizes = [8, 128], strides = [1, 1]} : vector<8x384xf32> to vector<8x128xf32>
    %186 = vector.extract_strided_slice %128 {offsets = [0, 128], sizes = [8, 128], strides = [1, 1]} : vector<8x384xf32> to vector<8x128xf32>
    %187 = arith.addf %185, %186 : vector<8x128xf32>
    %188 = arith.negf %187 : vector<8x128xf32>
    %189 = math.exp %188 : vector<8x128xf32>
    %cst_68 = arith.constant 1.000000e+00 : f32
    %190 = vector.broadcast %cst_68 : f32 to vector<8x128xf32>
    %191 = arith.addf %190, %189 : vector<8x128xf32>
    %192 = arith.divf %190, %191 : vector<8x128xf32>
    %193 = vector.extract_strided_slice %131 {offsets = [0, 256], sizes = [8, 128], strides = [1, 1]} : vector<8x384xf32> to vector<8x128xf32>
    %194 = vector.extract_strided_slice %128 {offsets = [0, 256], sizes = [8, 128], strides = [1, 1]} : vector<8x384xf32> to vector<8x128xf32>
    %195 = arith.addf %194, %14 : vector<8x128xf32>
    %196 = arith.mulf %184, %195 : vector<8x128xf32>
    %197 = arith.addf %193, %196 : vector<8x128xf32>
    %198 = math.tanh %197 : vector<8x128xf32>
    %cst_69 = arith.constant 1.000000e+00 : f32
    %199 = vector.broadcast %cst_69 : f32 to vector<8x128xf32>
    %200 = arith.subf %199, %192 : vector<8x128xf32>
    %201 = arith.mulf %200, %198 : vector<8x128xf32>
    %202 = arith.mulf %192, %127 : vector<8x128xf32>
    %203 = arith.addf %201, %202 : vector<8x128xf32>
    %c4_i32_70 = arith.constant 4 : i32
    %204 = arith.muli %arg0, %c4_i32_70 : i32
    %205 = arith.addi %204, %c1_i32 : i32
    %c11_i32_71 = arith.constant 11 : i32
    %206 = arith.subi %c11_i32_71, %205 : i32
    %c10_i32_72 = arith.constant 10 : i32
    %207 = arith.cmpi slt, %206, %c10_i32_72 : i32
    %208 = arith.extui %207 : i1 to i32
    %209 = arith.sitofp %208 : i32 to f32
    %210 = vector.broadcast %209 : f32 to vector<8x128xf32>
    %211 = arith.mulf %210, %203 : vector<8x128xf32>
    %cst_73 = arith.constant 1.000000e+00 : f32
    %212 = arith.subf %cst_73, %209 : f32
    %213 = vector.broadcast %212 : f32 to vector<8x128xf32>
    %214 = arith.mulf %213, %127 : vector<8x128xf32>
    %215 = arith.addf %211, %214 : vector<8x128xf32>
    %c1_74 = arith.constant 1 : index
    %c0_75 = arith.constant 0 : index
    %c0_76 = arith.constant 0 : index
    %216 = vector.load %arg7[%c1_74, %c0_75, %c0_76] : memref<2x8x128xf32, #tpu.memory_space<vmem>>, vector<1x8x128xf32>
    %217 = vector.shape_cast %216 : vector<1x8x128xf32> to vector<8x128xf32>
    %218 = vector.shape_cast %215 : vector<8x128xf32> to vector<1x8x128xf32>
    tpu.vector_store %arg7[%c1_74, %c0_75, %c0_76], %218 {strides = array<i32>} : memref<2x8x128xf32, #tpu.memory_space<vmem>>, vector<1x8x128xf32>,
    %219 = arith.index_cast %125 : i32 to index
    %c0_77 = arith.constant 0 : index
    %c0_78 = arith.constant 0 : index
    %220 = vector.load %arg6[%219, %c0_77, %c0_78] : memref<4x8x128xf32, #tpu.memory_space<vmem>>, vector<1x8x128xf32>
    %221 = vector.shape_cast %220 : vector<1x8x128xf32> to vector<8x128xf32>
    %222 = vector.shape_cast %215 : vector<8x128xf32> to vector<1x8x128xf32>
    tpu.vector_store %arg6[%219, %c0_77, %c0_78], %222 {strides = array<i32>} : memref<4x8x128xf32, #tpu.memory_space<vmem>>, vector<1x8x128xf32>,
    %c2_i32 = arith.constant 2 : i32
    %c0_79 = arith.constant 0 : index
    %c0_80 = arith.constant 0 : index
    %c0_81 = arith.constant 0 : index
    %223 = vector.load %arg7[%c0_79, %c0_80, %c0_81] : memref<2x8x128xf32, #tpu.memory_space<vmem>>, vector<1x8x128xf32>
    %224 = vector.shape_cast %223 : vector<1x8x128xf32> to vector<8x128xf32>
    %cst_82 = arith.constant dense<0.000000e+00> : vector<8x384xf32>
    %225 = tpu.matmul %224, %4, %cst_82 {dimension_numbers = #tpu.dot_dimension_numbers<[1], [0], [0], [1], [0, 0, 1, 1], [], []>} : vector<8x128xf32>, vector<128x384xf32>, vector<8x384xf32> -> vector<8x384xf32>
    %226 = arith.index_cast %c2_i32 : i32 to index
    %c0_83 = arith.constant 0 : index
    %c0_84 = arith.constant 0 : index
    %227 = vector.load %arg1[%226, %c0_83, %c0_84] : memref<4x8x384xf32, #tpu.memory_space<vmem>>, vector<1x8x384xf32>
    %228 = vector.shape_cast %227 : vector<1x8x384xf32> to vector<8x384xf32>
    %c3_i32_85 = arith.constant 3 : i32
    %229 = arith.subi %c3_i32_85, %c2_i32 : i32
    %c1_86 = arith.constant 1 : index
    %c0_87 = arith.constant 0 : index
    %c0_88 = arith.constant 0 : index
    %230 = vector.load %arg7[%c1_86, %c0_87, %c0_88] : memref<2x8x128xf32, #tpu.memory_space<vmem>>, vector<1x8x128xf32>
    %231 = vector.shape_cast %230 : vector<1x8x128xf32> to vector<8x128xf32>
    %cst_89 = arith.constant dense<0.000000e+00> : vector<8x384xf32>
    %232 = tpu.matmul %231, %6, %cst_89 {dimension_numbers = #tpu.dot_dimension_numbers<[1], [0], [0], [1], [0, 0, 1, 1], [], []>} : vector<8x128xf32>, vector<128x384xf32>, vector<8x384xf32> -> vector<8x384xf32>
    %233 = arith.index_cast %229 : i32 to index
    %c0_90 = arith.constant 0 : index
    %c0_91 = arith.constant 0 : index
    %234 = vector.load %arg2[%233, %c0_90, %c0_91] : memref<4x8x384xf32, #tpu.memory_space<vmem>>, vector<1x8x384xf32>
    %235 = vector.shape_cast %234 : vector<1x8x384xf32> to vector<8x384xf32>
    %236 = vector.extract_strided_slice %228 {offsets = [0, 0], sizes = [8, 128], strides = [1, 1]} : vector<8x384xf32> to vector<8x128xf32>
    %237 = vector.extract_strided_slice %225 {offsets = [0, 0], sizes = [8, 128], strides = [1, 1]} : vector<8x384xf32> to vector<8x128xf32>
    %238 = arith.addf %236, %237 : vector<8x128xf32>
    %239 = arith.negf %238 : vector<8x128xf32>
    %240 = math.exp %239 : vector<8x128xf32>
    %cst_92 = arith.constant 1.000000e+00 : f32
    %241 = vector.broadcast %cst_92 : f32 to vector<8x128xf32>
    %242 = arith.addf %241, %240 : vector<8x128xf32>
    %243 = arith.divf %241, %242 : vector<8x128xf32>
    %244 = vector.extract_strided_slice %228 {offsets = [0, 128], sizes = [8, 128], strides = [1, 1]} : vector<8x384xf32> to vector<8x128xf32>
    %245 = vector.extract_strided_slice %225 {offsets = [0, 128], sizes = [8, 128], strides = [1, 1]} : vector<8x384xf32> to vector<8x128xf32>
    %246 = arith.addf %244, %245 : vector<8x128xf32>
    %247 = arith.negf %246 : vector<8x128xf32>
    %248 = math.exp %247 : vector<8x128xf32>
    %cst_93 = arith.constant 1.000000e+00 : f32
    %249 = vector.broadcast %cst_93 : f32 to vector<8x128xf32>
    %250 = arith.addf %249, %248 : vector<8x128xf32>
    %251 = arith.divf %249, %250 : vector<8x128xf32>
    %252 = vector.extract_strided_slice %228 {offsets = [0, 256], sizes = [8, 128], strides = [1, 1]} : vector<8x384xf32> to vector<8x128xf32>
    %253 = vector.extract_strided_slice %225 {offsets = [0, 256], sizes = [8, 128], strides = [1, 1]} : vector<8x384xf32> to vector<8x128xf32>
    %254 = arith.addf %253, %10 : vector<8x128xf32>
    %255 = arith.mulf %243, %254 : vector<8x128xf32>
    %256 = arith.addf %252, %255 : vector<8x128xf32>
    %257 = math.tanh %256 : vector<8x128xf32>
    %cst_94 = arith.constant 1.000000e+00 : f32
    %258 = vector.broadcast %cst_94 : f32 to vector<8x128xf32>
    %259 = arith.subf %258, %251 : vector<8x128xf32>
    %260 = arith.mulf %259, %257 : vector<8x128xf32>
    %261 = arith.mulf %251, %224 : vector<8x128xf32>
    %262 = arith.addf %260, %261 : vector<8x128xf32>
    %c4_i32_95 = arith.constant 4 : i32
    %263 = arith.muli %arg0, %c4_i32_95 : i32
    %264 = arith.addi %263, %c2_i32 : i32
    %c10_i32_96 = arith.constant 10 : i32
    %265 = arith.cmpi slt, %264, %c10_i32_96 : i32
    %266 = arith.extui %265 : i1 to i32
    %267 = arith.sitofp %266 : i32 to f32
    %268 = vector.broadcast %267 : f32 to vector<8x128xf32>
    %269 = arith.mulf %268, %262 : vector<8x128xf32>
    %cst_97 = arith.constant 1.000000e+00 : f32
    %270 = arith.subf %cst_97, %267 : f32
    %271 = vector.broadcast %270 : f32 to vector<8x128xf32>
    %272 = arith.mulf %271, %224 : vector<8x128xf32>
    %273 = arith.addf %269, %272 : vector<8x128xf32>
    %c0_98 = arith.constant 0 : index
    %c0_99 = arith.constant 0 : index
    %c0_100 = arith.constant 0 : index
    %274 = vector.load %arg7[%c0_98, %c0_99, %c0_100] : memref<2x8x128xf32, #tpu.memory_space<vmem>>, vector<1x8x128xf32>
    %275 = vector.shape_cast %274 : vector<1x8x128xf32> to vector<8x128xf32>
    %276 = vector.shape_cast %273 : vector<8x128xf32> to vector<1x8x128xf32>
    tpu.vector_store %arg7[%c0_98, %c0_99, %c0_100], %276 {strides = array<i32>} : memref<2x8x128xf32, #tpu.memory_space<vmem>>, vector<1x8x128xf32>,
    %277 = arith.index_cast %c2_i32 : i32 to index
    %c0_101 = arith.constant 0 : index
    %c0_102 = arith.constant 0 : index
    %278 = vector.load %arg5[%277, %c0_101, %c0_102] : memref<4x8x128xf32, #tpu.memory_space<vmem>>, vector<1x8x128xf32>
    %279 = vector.shape_cast %278 : vector<1x8x128xf32> to vector<8x128xf32>
    %280 = vector.shape_cast %273 : vector<8x128xf32> to vector<1x8x128xf32>
    tpu.vector_store %arg5[%277, %c0_101, %c0_102], %280 {strides = array<i32>} : memref<4x8x128xf32, #tpu.memory_space<vmem>>, vector<1x8x128xf32>,
    %281 = vector.extract_strided_slice %235 {offsets = [0, 0], sizes = [8, 128], strides = [1, 1]} : vector<8x384xf32> to vector<8x128xf32>
    %282 = vector.extract_strided_slice %232 {offsets = [0, 0], sizes = [8, 128], strides = [1, 1]} : vector<8x384xf32> to vector<8x128xf32>
    %283 = arith.addf %281, %282 : vector<8x128xf32>
    %284 = arith.negf %283 : vector<8x128xf32>
    %285 = math.exp %284 : vector<8x128xf32>
    %cst_103 = arith.constant 1.000000e+00 : f32
    %286 = vector.broadcast %cst_103 : f32 to vector<8x128xf32>
    %287 = arith.addf %286, %285 : vector<8x128xf32>
    %288 = arith.divf %286, %287 : vector<8x128xf32>
    %289 = vector.extract_strided_slice %235 {offsets = [0, 128], sizes = [8, 128], strides = [1, 1]} : vector<8x384xf32> to vector<8x128xf32>
    %290 = vector.extract_strided_slice %232 {offsets = [0, 128], sizes = [8, 128], strides = [1, 1]} : vector<8x384xf32> to vector<8x128xf32>
    %291 = arith.addf %289, %290 : vector<8x128xf32>
    %292 = arith.negf %291 : vector<8x128xf32>
    %293 = math.exp %292 : vector<8x128xf32>
    %cst_104 = arith.constant 1.000000e+00 : f32
    %294 = vector.broadcast %cst_104 : f32 to vector<8x128xf32>
    %295 = arith.addf %294, %293 : vector<8x128xf32>
    %296 = arith.divf %294, %295 : vector<8x128xf32>
    %297 = vector.extract_strided_slice %235 {offsets = [0, 256], sizes = [8, 128], strides = [1, 1]} : vector<8x384xf32> to vector<8x128xf32>
    %298 = vector.extract_strided_slice %232 {offsets = [0, 256], sizes = [8, 128], strides = [1, 1]} : vector<8x384xf32> to vector<8x128xf32>
    %299 = arith.addf %298, %14 : vector<8x128xf32>
    %300 = arith.mulf %288, %299 : vector<8x128xf32>
    %301 = arith.addf %297, %300 : vector<8x128xf32>
    %302 = math.tanh %301 : vector<8x128xf32>
    %cst_105 = arith.constant 1.000000e+00 : f32
    %303 = vector.broadcast %cst_105 : f32 to vector<8x128xf32>
    %304 = arith.subf %303, %296 : vector<8x128xf32>
    %305 = arith.mulf %304, %302 : vector<8x128xf32>
    %306 = arith.mulf %296, %231 : vector<8x128xf32>
    %307 = arith.addf %305, %306 : vector<8x128xf32>
    %c4_i32_106 = arith.constant 4 : i32
    %308 = arith.muli %arg0, %c4_i32_106 : i32
    %309 = arith.addi %308, %c2_i32 : i32
    %c11_i32_107 = arith.constant 11 : i32
    %310 = arith.subi %c11_i32_107, %309 : i32
    %c10_i32_108 = arith.constant 10 : i32
    %311 = arith.cmpi slt, %310, %c10_i32_108 : i32
    %312 = arith.extui %311 : i1 to i32
    %313 = arith.sitofp %312 : i32 to f32
    %314 = vector.broadcast %313 : f32 to vector<8x128xf32>
    %315 = arith.mulf %314, %307 : vector<8x128xf32>
    %cst_109 = arith.constant 1.000000e+00 : f32
    %316 = arith.subf %cst_109, %313 : f32
    %317 = vector.broadcast %316 : f32 to vector<8x128xf32>
    %318 = arith.mulf %317, %231 : vector<8x128xf32>
    %319 = arith.addf %315, %318 : vector<8x128xf32>
    %c1_110 = arith.constant 1 : index
    %c0_111 = arith.constant 0 : index
    %c0_112 = arith.constant 0 : index
    %320 = vector.load %arg7[%c1_110, %c0_111, %c0_112] : memref<2x8x128xf32, #tpu.memory_space<vmem>>, vector<1x8x128xf32>
    %321 = vector.shape_cast %320 : vector<1x8x128xf32> to vector<8x128xf32>
    %322 = vector.shape_cast %319 : vector<8x128xf32> to vector<1x8x128xf32>
    tpu.vector_store %arg7[%c1_110, %c0_111, %c0_112], %322 {strides = array<i32>} : memref<2x8x128xf32, #tpu.memory_space<vmem>>, vector<1x8x128xf32>,
    %323 = arith.index_cast %229 : i32 to index
    %c0_113 = arith.constant 0 : index
    %c0_114 = arith.constant 0 : index
    %324 = vector.load %arg6[%323, %c0_113, %c0_114] : memref<4x8x128xf32, #tpu.memory_space<vmem>>, vector<1x8x128xf32>
    %325 = vector.shape_cast %324 : vector<1x8x128xf32> to vector<8x128xf32>
    %326 = vector.shape_cast %319 : vector<8x128xf32> to vector<1x8x128xf32>
    tpu.vector_store %arg6[%323, %c0_113, %c0_114], %326 {strides = array<i32>} : memref<4x8x128xf32, #tpu.memory_space<vmem>>, vector<1x8x128xf32>,
    %c3_i32_115 = arith.constant 3 : i32
    %c0_116 = arith.constant 0 : index
    %c0_117 = arith.constant 0 : index
    %c0_118 = arith.constant 0 : index
    %327 = vector.load %arg7[%c0_116, %c0_117, %c0_118] : memref<2x8x128xf32, #tpu.memory_space<vmem>>, vector<1x8x128xf32>
    %328 = vector.shape_cast %327 : vector<1x8x128xf32> to vector<8x128xf32>
    %cst_119 = arith.constant dense<0.000000e+00> : vector<8x384xf32>
    %329 = tpu.matmul %328, %4, %cst_119 {dimension_numbers = #tpu.dot_dimension_numbers<[1], [0], [0], [1], [0, 0, 1, 1], [], []>} : vector<8x128xf32>, vector<128x384xf32>, vector<8x384xf32> -> vector<8x384xf32>
    %330 = arith.index_cast %c3_i32_115 : i32 to index
    %c0_120 = arith.constant 0 : index
    %c0_121 = arith.constant 0 : index
    %331 = vector.load %arg1[%330, %c0_120, %c0_121] : memref<4x8x384xf32, #tpu.memory_space<vmem>>, vector<1x8x384xf32>
    %332 = vector.shape_cast %331 : vector<1x8x384xf32> to vector<8x384xf32>
    %c3_i32_122 = arith.constant 3 : i32
    %333 = arith.subi %c3_i32_122, %c3_i32_115 : i32
    %c1_123 = arith.constant 1 : index
    %c0_124 = arith.constant 0 : index
    %c0_125 = arith.constant 0 : index
    %334 = vector.load %arg7[%c1_123, %c0_124, %c0_125] : memref<2x8x128xf32, #tpu.memory_space<vmem>>, vector<1x8x128xf32>
    %335 = vector.shape_cast %334 : vector<1x8x128xf32> to vector<8x128xf32>
    %cst_126 = arith.constant dense<0.000000e+00> : vector<8x384xf32>
    %336 = tpu.matmul %335, %6, %cst_126 {dimension_numbers = #tpu.dot_dimension_numbers<[1], [0], [0], [1], [0, 0, 1, 1], [], []>} : vector<8x128xf32>, vector<128x384xf32>, vector<8x384xf32> -> vector<8x384xf32>
    %337 = arith.index_cast %333 : i32 to index
    %c0_127 = arith.constant 0 : index
    %c0_128 = arith.constant 0 : index
    %338 = vector.load %arg2[%337, %c0_127, %c0_128] : memref<4x8x384xf32, #tpu.memory_space<vmem>>, vector<1x8x384xf32>
    %339 = vector.shape_cast %338 : vector<1x8x384xf32> to vector<8x384xf32>
    %340 = vector.extract_strided_slice %332 {offsets = [0, 0], sizes = [8, 128], strides = [1, 1]} : vector<8x384xf32> to vector<8x128xf32>
    %341 = vector.extract_strided_slice %329 {offsets = [0, 0], sizes = [8, 128], strides = [1, 1]} : vector<8x384xf32> to vector<8x128xf32>
    %342 = arith.addf %340, %341 : vector<8x128xf32>
    %343 = arith.negf %342 : vector<8x128xf32>
    %344 = math.exp %343 : vector<8x128xf32>
    %cst_129 = arith.constant 1.000000e+00 : f32
    %345 = vector.broadcast %cst_129 : f32 to vector<8x128xf32>
    %346 = arith.addf %345, %344 : vector<8x128xf32>
    %347 = arith.divf %345, %346 : vector<8x128xf32>
    %348 = vector.extract_strided_slice %332 {offsets = [0, 128], sizes = [8, 128], strides = [1, 1]} : vector<8x384xf32> to vector<8x128xf32>
    %349 = vector.extract_strided_slice %329 {offsets = [0, 128], sizes = [8, 128], strides = [1, 1]} : vector<8x384xf32> to vector<8x128xf32>
    %350 = arith.addf %348, %349 : vector<8x128xf32>
    %351 = arith.negf %350 : vector<8x128xf32>
    %352 = math.exp %351 : vector<8x128xf32>
    %cst_130 = arith.constant 1.000000e+00 : f32
    %353 = vector.broadcast %cst_130 : f32 to vector<8x128xf32>
    %354 = arith.addf %353, %352 : vector<8x128xf32>
    %355 = arith.divf %353, %354 : vector<8x128xf32>
    %356 = vector.extract_strided_slice %332 {offsets = [0, 256], sizes = [8, 128], strides = [1, 1]} : vector<8x384xf32> to vector<8x128xf32>
    %357 = vector.extract_strided_slice %329 {offsets = [0, 256], sizes = [8, 128], strides = [1, 1]} : vector<8x384xf32> to vector<8x128xf32>
    %358 = arith.addf %357, %10 : vector<8x128xf32>
    %359 = arith.mulf %347, %358 : vector<8x128xf32>
    %360 = arith.addf %356, %359 : vector<8x128xf32>
    %361 = math.tanh %360 : vector<8x128xf32>
    %cst_131 = arith.constant 1.000000e+00 : f32
    %362 = vector.broadcast %cst_131 : f32 to vector<8x128xf32>
    %363 = arith.subf %362, %355 : vector<8x128xf32>
    %364 = arith.mulf %363, %361 : vector<8x128xf32>
    %365 = arith.mulf %355, %328 : vector<8x128xf32>
    %366 = arith.addf %364, %365 : vector<8x128xf32>
    %c4_i32_132 = arith.constant 4 : i32
    %367 = arith.muli %arg0, %c4_i32_132 : i32
    %368 = arith.addi %367, %c3_i32_115 : i32
    %c10_i32_133 = arith.constant 10 : i32
    %369 = arith.cmpi slt, %368, %c10_i32_133 : i32
    %370 = arith.extui %369 : i1 to i32
    %371 = arith.sitofp %370 : i32 to f32
    %372 = vector.broadcast %371 : f32 to vector<8x128xf32>
    %373 = arith.mulf %372, %366 : vector<8x128xf32>
    %cst_134 = arith.constant 1.000000e+00 : f32
    %374 = arith.subf %cst_134, %371 : f32
    %375 = vector.broadcast %374 : f32 to vector<8x128xf32>
    %376 = arith.mulf %375, %328 : vector<8x128xf32>
    %377 = arith.addf %373, %376 : vector<8x128xf32>
    %c0_135 = arith.constant 0 : index
    %c0_136 = arith.constant 0 : index
    %c0_137 = arith.constant 0 : index
    %378 = vector.load %arg7[%c0_135, %c0_136, %c0_137] : memref<2x8x128xf32, #tpu.memory_space<vmem>>, vector<1x8x128xf32>
    %379 = vector.shape_cast %378 : vector<1x8x128xf32> to vector<8x128xf32>
    %380 = vector.shape_cast %377 : vector<8x128xf32> to vector<1x8x128xf32>
    tpu.vector_store %arg7[%c0_135, %c0_136, %c0_137], %380 {strides = array<i32>} : memref<2x8x128xf32, #tpu.memory_space<vmem>>, vector<1x8x128xf32>,
    %381 = arith.index_cast %c3_i32_115 : i32 to index
    %c0_138 = arith.constant 0 : index
    %c0_139 = arith.constant 0 : index
    %382 = vector.load %arg5[%381, %c0_138, %c0_139] : memref<4x8x128xf32, #tpu.memory_space<vmem>>, vector<1x8x128xf32>
    %383 = vector.shape_cast %382 : vector<1x8x128xf32> to vector<8x128xf32>
    %384 = vector.shape_cast %377 : vector<8x128xf32> to vector<1x8x128xf32>
    tpu.vector_store %arg5[%381, %c0_138, %c0_139], %384 {strides = array<i32>} : memref<4x8x128xf32, #tpu.memory_space<vmem>>, vector<1x8x128xf32>,
    %385 = vector.extract_strided_slice %339 {offsets = [0, 0], sizes = [8, 128], strides = [1, 1]} : vector<8x384xf32> to vector<8x128xf32>
    %386 = vector.extract_strided_slice %336 {offsets = [0, 0], sizes = [8, 128], strides = [1, 1]} : vector<8x384xf32> to vector<8x128xf32>
    %387 = arith.addf %385, %386 : vector<8x128xf32>
    %388 = arith.negf %387 : vector<8x128xf32>
    %389 = math.exp %388 : vector<8x128xf32>
    %cst_140 = arith.constant 1.000000e+00 : f32
    %390 = vector.broadcast %cst_140 : f32 to vector<8x128xf32>
    %391 = arith.addf %390, %389 : vector<8x128xf32>
    %392 = arith.divf %390, %391 : vector<8x128xf32>
    %393 = vector.extract_strided_slice %339 {offsets = [0, 128], sizes = [8, 128], strides = [1, 1]} : vector<8x384xf32> to vector<8x128xf32>
    %394 = vector.extract_strided_slice %336 {offsets = [0, 128], sizes = [8, 128], strides = [1, 1]} : vector<8x384xf32> to vector<8x128xf32>
    %395 = arith.addf %393, %394 : vector<8x128xf32>
    %396 = arith.negf %395 : vector<8x128xf32>
    %397 = math.exp %396 : vector<8x128xf32>
    %cst_141 = arith.constant 1.000000e+00 : f32
    %398 = vector.broadcast %cst_141 : f32 to vector<8x128xf32>
    %399 = arith.addf %398, %397 : vector<8x128xf32>
    %400 = arith.divf %398, %399 : vector<8x128xf32>
    %401 = vector.extract_strided_slice %339 {offsets = [0, 256], sizes = [8, 128], strides = [1, 1]} : vector<8x384xf32> to vector<8x128xf32>
    %402 = vector.extract_strided_slice %336 {offsets = [0, 256], sizes = [8, 128], strides = [1, 1]} : vector<8x384xf32> to vector<8x128xf32>
    %403 = arith.addf %402, %14 : vector<8x128xf32>
    %404 = arith.mulf %392, %403 : vector<8x128xf32>
    %405 = arith.addf %401, %404 : vector<8x128xf32>
    %406 = math.tanh %405 : vector<8x128xf32>
    %cst_142 = arith.constant 1.000000e+00 : f32
    %407 = vector.broadcast %cst_142 : f32 to vector<8x128xf32>
    %408 = arith.subf %407, %400 : vector<8x128xf32>
    %409 = arith.mulf %408, %406 : vector<8x128xf32>
    %410 = arith.mulf %400, %335 : vector<8x128xf32>
    %411 = arith.addf %409, %410 : vector<8x128xf32>
    %c4_i32_143 = arith.constant 4 : i32
    %412 = arith.muli %arg0, %c4_i32_143 : i32
    %413 = arith.addi %412, %c3_i32_115 : i32
    %c11_i32_144 = arith.constant 11 : i32
    %414 = arith.subi %c11_i32_144, %413 : i32
    %c10_i32_145 = arith.constant 10 : i32
    %415 = arith.cmpi slt, %414, %c10_i32_145 : i32
    %416 = arith.extui %415 : i1 to i32
    %417 = arith.sitofp %416 : i32 to f32
    %418 = vector.broadcast %417 : f32 to vector<8x128xf32>
    %419 = arith.mulf %418, %411 : vector<8x128xf32>
    %cst_146 = arith.constant 1.000000e+00 : f32
    %420 = arith.subf %cst_146, %417 : f32
    %421 = vector.broadcast %420 : f32 to vector<8x128xf32>
    %422 = arith.mulf %421, %335 : vector<8x128xf32>
    %423 = arith.addf %419, %422 : vector<8x128xf32>
    %c1_147 = arith.constant 1 : index
    %c0_148 = arith.constant 0 : index
    %c0_149 = arith.constant 0 : index
    %424 = vector.load %arg7[%c1_147, %c0_148, %c0_149] : memref<2x8x128xf32, #tpu.memory_space<vmem>>, vector<1x8x128xf32>
    %425 = vector.shape_cast %424 : vector<1x8x128xf32> to vector<8x128xf32>
    %426 = vector.shape_cast %423 : vector<8x128xf32> to vector<1x8x128xf32>
    tpu.vector_store %arg7[%c1_147, %c0_148, %c0_149], %426 {strides = array<i32>} : memref<2x8x128xf32, #tpu.memory_space<vmem>>, vector<1x8x128xf32>,
    %427 = arith.index_cast %333 : i32 to index
    %c0_150 = arith.constant 0 : index
    %c0_151 = arith.constant 0 : index
    %428 = vector.load %arg6[%427, %c0_150, %c0_151] : memref<4x8x128xf32, #tpu.memory_space<vmem>>, vector<1x8x128xf32>
    %429 = vector.shape_cast %428 : vector<1x8x128xf32> to vector<8x128xf32>
    %430 = vector.shape_cast %423 : vector<8x128xf32> to vector<1x8x128xf32>
    tpu.vector_store %arg6[%427, %c0_150, %c0_151], %430 {strides = array<i32>} : memref<4x8x128xf32, #tpu.memory_space<vmem>>, vector<1x8x128xf32>,
    %c4_i32_152 = arith.constant 4 : i32
    return
  }
  func.func @transform_0(%arg0: i32) -> (i32, i32, i32) {
    %c0_i32 = arith.constant 0 : i32
    %c0_i32_0 = arith.constant 0 : i32
    %c0_i32_1 = arith.constant 0 : i32
    return %arg0, %c0_i32, %c0_i32_0 : i32, i32, i32
  }
  func.func @transform_1(%arg0: i32) -> (i32, i32, i32) {
    %c2_i32 = arith.constant 2 : i32
    %0 = arith.subi %c2_i32, %arg0 : i32
    %c0_i32 = arith.constant 0 : i32
    %c0_i32_0 = arith.constant 0 : i32
    %c0_i32_1 = arith.constant 0 : i32
    return %0, %c0_i32, %c0_i32_0 : i32, i32, i32
  }
  func.func @transform_2(%arg0: i32) -> (i32, i32, i32) {
    %c0_i32 = arith.constant 0 : i32
    %c0_i32_0 = arith.constant 0 : i32
    %c0_i32_1 = arith.constant 0 : i32
    %c0_i32_2 = arith.constant 0 : i32
    return %c0_i32, %c0_i32_0, %c0_i32_1 : i32, i32, i32
  }
  func.func @transform_3(%arg0: i32) -> (i32, i32, i32) {
    %c0_i32 = arith.constant 0 : i32
    %c0_i32_0 = arith.constant 0 : i32
    %c0_i32_1 = arith.constant 0 : i32
    %c0_i32_2 = arith.constant 0 : i32
    return %c0_i32, %c0_i32_0, %c0_i32_1 : i32, i32, i32
  }
  func.func @transform_4(%arg0: i32) -> (i32, i32, i32) {
    %c0_i32 = arith.constant 0 : i32
    %c0_i32_0 = arith.constant 0 : i32
    %c0_i32_1 = arith.constant 0 : i32
    return %arg0, %c0_i32, %c0_i32_0 : i32, i32, i32
  }
  func.func @transform_5(%arg0: i32) -> (i32, i32, i32) {
    %c2_i32 = arith.constant 2 : i32
    %0 = arith.subi %c2_i32, %arg0 : i32
    %c0_i32 = arith.constant 0 : i32
    %c0_i32_0 = arith.constant 0 : i32
    %c0_i32_1 = arith.constant 0 : i32
    return %0, %c0_i32, %c0_i32_0 : i32, i32, i32
  }
}

</mosaic_0001>

<llo_original>
// kernel: tpu_custom_call.1
$region0: #{tpu_custom_call.1}
  #allocation0 [shape = 'u32[]', space=smem, size = 0x4, offset = 0x4, fixed_abs, tag = 'smem constant byte address 0x4 - core index']
  #allocation1 [shape = 'u32[144,128]{1,0:T(1,128)}', space=vmem, size = 0x12000, scoped, tag = 'internal scratch']
  #allocation2 [shape = 'f32[2,8,128]{2,1,0:T(8,128)}', space=vmem, size = 0x2000, scoped, tag = 'scratch operand']
  %s0 = inlined_call_operand.hbm [shape: f32[12,8,384], index: 0, kind: input, shape index: {}]
  %s1 = inlined_call_operand.hbm [shape: f32[12,8,384], index: 1, kind: input, shape index: {}]
  %s2 = inlined_call_operand.hbm [shape: f32[2,128,384], index: 2, kind: input, shape index: {}]
  %s3 = inlined_call_operand.vmem [shape: f32[2,1,128], index: 3, kind: input, shape index: {}]
  %s4 = inlined_call_operand.hbm [shape: f32[12,8,128], index: 4, kind: output, shape index: {0}]
  %s5 = inlined_call_operand.hbm [shape: f32[12,8,128], index: 5, kind: output, shape index: {1}]
  %6 = xla_tuple %s4, %s5
  %s7 = sld [smem:[#allocation0]]
  $region73: #{tpu_custom_call.1} parent=0
    _
  %s9 = ssub.s32 1, %s7
  %s10 = scalar_select 0, %s9, %s7
  $region1: #{tpu_custom_call.1} parent=0
    #allocation3 [shape = 'u8[98304]{0}', space=vmem, size = 0x18000, scoped, tag = 'input window, operand 0']
    #allocation4 [shape = 's32[2]{0}', space=sflag, size = 0x8, scoped, tag = 'scoped memory for tpu_custom_call.1']
    #allocation5 [shape = 's32[2]{0}', space=sflag, size = 0x8, scoped, tag = 'scoped memory for tpu_custom_call.1']
    #allocation6 [shape = 'u8[98304]{0}', space=vmem, size = 0x18000, scoped, tag = 'input window, operand 1']
    #allocation7 [shape = 's32[2]{0}', space=sflag, size = 0x8, scoped, tag = 'scoped memory for tpu_custom_call.1']
    #allocation8 [shape = 'u8[393216]{0}', space=vmem, size = 0x60000, scoped, tag = 'input window, operand 2, single buffered']
    #allocation9 [shape = 'u8[32768]{0}', space=vmem, size = 0x8000, scoped, tag = 'output window, operand 0']
    #allocation10 [shape = 'u8[32768]{0}', space=vmem, size = 0x8000, scoped, tag = 'output window, operand 1']
    #allocation11 [shape = 's32[2]{0}', space=sflag, size = 0x8, scoped, tag = 'scoped memory for tpu_custom_call.1']
    %11 = vsyncpa [#allocation4], 0
    %s12 = scalar_lea.sflag [#allocation4], 1
    %13 = vsyncpa %s12, 0
    %14 = vsyncpa [#allocation7], 0
    %s15 = scalar_lea.sflag [#allocation7], 1
    %16 = vsyncpa %s15, 0
    %17 = vsyncpa [#allocation5], 0
    %s18 = scalar_lea.sflag [#allocation5], 1
    %19 = vsyncpa %s18, 0
    %20 = vsyncpa [#allocation11], 0
    %s21 = scalar_lea.sflag [#allocation11], 1
    %22 = vsyncpa %s21, 0
    loop: start=0, step=1, limit=5
    $region2: #{tpu_custom_call.1} parent=1 // loop_pre_header
      _
    $region3: #{tpu_custom_call.1} parent=1 // loop_header
      %s24 = sphi 0, %s28
      %p25 = scmp.ge.s32.totalorder %s24, 5
      %s34 = sphi 0, %s36
      %s37 = sphi 0, %s34
      %s38 = sphi 0, %s37
      %s54 = sphi 0, %s38
      %s62 = sphi 0, %s64
      %s65 = sphi 0, %s62
      %s66 = sphi 0, %s65
      %s82 = sphi 0, %s66
      %s86 = sphi 0, %s86
      %s88 = sphi 0, %s86
      %s89 = sphi 0, %s88
      %s103 = sphi 0, %s89
      %s107 = sphi 0, %s107
      %s109 = sphi 0, %s107
      %s110 = sphi 0, %s109
      %s124 = sphi 0, %s110
      %s130 = sphi 0, %s132
      %s133 = sphi 0, %s130
      %s134 = sphi 0, %s133
      %s150 = sphi 0, %s134
      %s158 = sphi 0, %s160
      %s161 = sphi 0, %s158
      %s162 = sphi 0, %s161
      %s178 = sphi 0, %s162
    $region4: #{tpu_custom_call.1} parent=1 // loop_header_branch
      %27 = sbr.rel (%p25) target = $region8
    $region5: #{tpu_custom_call.1} parent=1 // loop_body
      %s29 = ssub.s32 %s24, 1
      %s30 = ssub.s32 %s24, 2
      %s31 = sadd.s32 %s24, 1
      %s32 = ssub.s32 %s24, %s31
      %p33 = scmp.eq.s32.totalorder %s32, 0
      %s35 = sadd.s32 %s34, 1
      %s36 = scalar_select %p33, %s34, %s35
      %p39 = pneg %p33
      %p40 = scmp.eq.s32.totalorder %s24, 2
      %p41 = por %p39, %p40
      %p42 = scmp.ne.s32.totalorder %s34, %s37
      %p43 = scmp.eq.s32.totalorder %s24, 0
      %p44 = por %p42, %p43
      %p45 = scmp.ne.s32.totalorder %s34, %s37
      %p46 = scmp.eq.s32.totalorder %s29, 2
      %p47 = por %p45, %p46
      %p48 = scmp.ne.s32.totalorder %s37, %s38
      %p49 = scmp.eq.s32.totalorder %s29, 0
      %p50 = por %p48, %p49
      %p51 = scmp.ne.s32.totalorder %s37, %s38
      %p52 = scmp.eq.s32.totalorder %s30, 2
      %p53 = por %p51, %p52
      %p55 = scmp.ne.s32.totalorder %s38, %s54
      %p56 = scmp.eq.s32.totalorder %s30, 0
      %p57 = por %p55, %p56
      %s58 = ssub.s32 2, %s24
      %s59 = ssub.s32 2, %s31
      %s60 = ssub.s32 %s58, %s59
      %p61 = scmp.eq.s32.totalorder %s60, 0
      %s63 = sadd.s32 %s62, 1
      %s64 = scalar_select %p61, %s62, %s63
      %p67 = pneg %p61
      %p68 = scmp.eq.s32.totalorder %s24, 2
      %p69 = por %p67, %p68
      %p70 = scmp.ne.s32.totalorder %s62, %s65
      %p71 = scmp.eq.s32.totalorder %s24, 0
      %p72 = por %p70, %p71
      %p73 = scmp.ne.s32.totalorder %s62, %s65
      %p74 = scmp.eq.s32.totalorder %s29, 2
      %p75 = por %p73, %p74
      %p76 = scmp.ne.s32.totalorder %s65, %s66
      %p77 = scmp.eq.s32.totalorder %s29, 0
      %p78 = por %p76, %p77
      %p79 = scmp.ne.s32.totalorder %s65, %s66
      %p80 = scmp.eq.s32.totalorder %s30, 2
      %p81 = por %p79, %p80
      %p83 = scmp.ne.s32.totalorder %s66, %s82
      %p84 = scmp.eq.s32.totalorder %s30, 0
      %p85 = por %p83, %p84
      %s87 = sadd.s32 %s86, 1
      %p90 = scmp.eq.s32.totalorder %s24, 2
      %p91 = scmp.ne.s32.totalorder %s86, %s88
      %p92 = scmp.eq.s32.totalorder %s24, 0
      %p93 = por %p91, %p92
      %p94 = scmp.ne.s32.totalorder %s86, %s88
      %p95 = scmp.eq.s32.totalorder %s29, 2
      %p96 = por %p94, %p95
      %p97 = scmp.ne.s32.totalorder %s88, %s89
      %p98 = scmp.eq.s32.totalorder %s29, 0
      %p99 = por %p97, %p98
      %p100 = scmp.ne.s32.totalorder %s88, %s89
      %p101 = scmp.eq.s32.totalorder %s30, 2
      %p102 = por %p100, %p101
      %p104 = scmp.ne.s32.totalorder %s89, %s103
      %p105 = scmp.eq.s32.totalorder %s30, 0
      %p106 = por %p104, %p105
      %s108 = sadd.s32 %s107, 1
      %p111 = scmp.eq.s32.totalorder %s24, 2
      %p112 = scmp.ne.s32.totalorder %s107, %s109
      %p113 = scmp.eq.s32.totalorder %s24, 0
      %p114 = por %p112, %p113
      %p115 = scmp.ne.s32.totalorder %s107, %s109
      %p116 = scmp.eq.s32.totalorder %s29, 2
      %p117 = por %p115, %p116
      %p118 = scmp.ne.s32.totalorder %s109, %s110
      %p119 = scmp.eq.s32.totalorder %s29, 0
      %p120 = por %p118, %p119
      %p121 = scmp.ne.s32.totalorder %s109, %s110
      %p122 = scmp.eq.s32.totalorder %s30, 2
      %p123 = por %p121, %p122
      %p125 = scmp.ne.s32.totalorder %s110, %s124
      %p126 = scmp.eq.s32.totalorder %s30, 0
      %p127 = por %p125, %p126
      %s128 = ssub.s32 %s24, %s31
      %p129 = scmp.eq.s32.totalorder %s128, 0
      %s131 = sadd.s32 %s130, 1
      %s132 = scalar_select %p129, %s130, %s131
      %p135 = pneg %p129
      %p136 = scmp.eq.s32.totalorder %s24, 2
      %p137 = por %p135, %p136
      %p138 = scmp.ne.s32.totalorder %s130, %s133
      %p139 = scmp.eq.s32.totalorder %s24, 0
      %p140 = por %p138, %p139
      %p141 = scmp.ne.s32.totalorder %s130, %s133
      %p142 = scmp.eq.s32.totalorder %s29, 2
      %p143 = por %p141, %p142
      %p144 = scmp.ne.s32.totalorder %s133, %s134
      %p145 = scmp.eq.s32.totalorder %s29, 0
      %p146 = por %p144, %p145
      %p147 = scmp.ne.s32.totalorder %s133, %s134
      %p148 = scmp.eq.s32.totalorder %s30, 2
      %p149 = por %p147, %p148
      %p151 = scmp.ne.s32.totalorder %s134, %s150
      %p152 = scmp.eq.s32.totalorder %s30, 0
      %p153 = por %p151, %p152
      %s154 = ssub.s32 2, %s24
      %s155 = ssub.s32 2, %s31
      %s156 = ssub.s32 %s154, %s155
      %p157 = scmp.eq.s32.totalorder %s156, 0
      %s159 = sadd.s32 %s158, 1
      %s160 = scalar_select %p157, %s158, %s159
      %p163 = pneg %p157
      %p164 = scmp.eq.s32.totalorder %s24, 2
      %p165 = por %p163, %p164
      %p166 = scmp.ne.s32.totalorder %s158, %s161
      %p167 = scmp.eq.s32.totalorder %s24, 0
      %p168 = por %p166, %p167
      %p169 = scmp.ne.s32.totalorder %s158, %s161
      %p170 = scmp.eq.s32.totalorder %s29, 2
      %p171 = por %p169, %p170
      %p172 = scmp.ne.s32.totalorder %s161, %s162
      %p173 = scmp.eq.s32.totalorder %s29, 0
      %p174 = por %p172, %p173
      %p175 = scmp.ne.s32.totalorder %s161, %s162
      %p176 = scmp.eq.s32.totalorder %s30, 2
      %p177 = por %p175, %p176
      %p179 = scmp.ne.s32.totalorder %s162, %s178
      %p180 = scmp.eq.s32.totalorder %s30, 0
      %p181 = por %p179, %p180
      %p182 = scmp.le.s32.totalorder 1, %s24
      %p183 = scmp.lt.s32.totalorder %s24, 4
      %p184 = pnand %p182, %p183
      %p185 = pneg %p184
      // Predicated region
      $region9: #{tpu_custom_call.1} parent=5 // pred_check
        _
      $region10: #{tpu_custom_call.1} parent=5 // pred_check_branch
        %187 = sbr.rel (%p184) target = $region12
      $region11: #{tpu_custom_call.1} parent=5 // pred_region
        %s188 = ssub.s32 %s24, 1
        // Predicated region
        $region13: #{tpu_custom_call.1} parent=11 // pred_check
          %p189 = pneg %p99
        $region14: #{tpu_custom_call.1} parent=11 // pred_check_branch
          %191 = sbr.rel (%p189) target = $region16
        $region15: #{tpu_custom_call.1} parent=11 // pred_region
          %s193 = ssub.s32 12288, 12288
          %194 = vsyncadd [#allocation7], %s193
          %s195 = sshll.u32 [#allocation8], 4
          %s196 = int_to_ptr.vmem [resolvable:$true] %s195
          %201 = dma.hbm_to_vmem [thread:$0]  %s2, 12288, %s196, [#allocation7], 384, 384, 24
        $region16: #{tpu_custom_call.1} parent=11 // pred_fallthru
          _
        // Predicated region
        $region17: #{tpu_custom_call.1} parent=11 // pred_check
          %p202 = pneg %p120
        $region18: #{tpu_custom_call.1} parent=11 // pred_check_branch
          %204 = sbr.rel (%p202) target = $region20
        $region19: #{tpu_custom_call.1} parent=11 // pred_region
          _
        $region20: #{tpu_custom_call.1} parent=11 // pred_fallthru
          _
      $region12: #{tpu_custom_call.1} parent=5 // pred_fallthru
        _
      %p205 = scmp.lt.s32.totalorder %s24, 3
      // Predicated region
      $region21: #{tpu_custom_call.1} parent=5 // pred_check
        %p206 = pneg %p205
      $region22: #{tpu_custom_call.1} parent=5 // pred_check_branch
        %208 = sbr.rel (%p206) target = $region24
      $region23: #{tpu_custom_call.1} parent=5 // pred_region
        // Predicated region
        $region25: #{tpu_custom_call.1} parent=23 // pred_check
          %p209 = pneg %p44
        $region26: #{tpu_custom_call.1} parent=23 // pred_check_branch
          %211 = sbr.rel (%p209) target = $region28
        $region27: #{tpu_custom_call.1} parent=23 // pred_region
          %s212 = sand.u32 %s34, 1
          %s213 = scalar_lea.sflag [#allocation4], %s212
          %s214 = sand.u32 %s34, 1
          %s215 = smul.addr %s214, 96
          %s216 = scalar_lea.vmem [#allocation3], %s215
          %s217 = smul.u32 4, %s24
          %s219 = ssub.s32 1536, 1536
          %220 = vsyncadd %s213, %s219
          %s221 = smul.addr %s217, 3
          %s222 = smul.addr %s221, 128
          %s223 = scalar_lea.hbm %s0, %s222
          %s224 = sshll.u32 %s216, 4
          %s225 = int_to_ptr.vmem [resolvable:$true] %s224
          %230 = dma.hbm_to_vmem [thread:$0]  %s223, 1536, %s225, %s213, 384, 384, 24
        $region28: #{tpu_custom_call.1} parent=23 // pred_fallthru
          _
        // Predicated region
        $region29: #{tpu_custom_call.1} parent=23 // pred_check
          %p231 = pneg %p72
        $region30: #{tpu_custom_call.1} parent=23 // pred_check_branch
          %233 = sbr.rel (%p231) target = $region32
        $region31: #{tpu_custom_call.1} parent=23 // pred_region
          %s234 = sand.u32 %s24, 1
          %s235 = scalar_lea.sflag [#allocation7], %s234
          %s236 = sand.u32 %s62, 1
          %s237 = smul.addr %s236, 96
          %s238 = scalar_lea.vmem [#allocation6], %s237
          %s239 = ssub.s32 2, %s24
          %s240 = smul.u32 4, %s239
          %s242 = ssub.s32 1536, 1536
          %243 = vsyncadd %s235, %s242
          %s244 = smul.addr %s240, 3
          %s245 = smul.addr %s244, 128
          %s246 = scalar_lea.hbm %s1, %s245
          %s247 = sshll.u32 %s238, 4
          %s248 = int_to_ptr.vmem [resolvable:$true] %s247
          %253 = dma.hbm_to_vmem [thread:$0]  %s246, 1536, %s248, %s235, 384, 384, 24
        $region32: #{tpu_custom_call.1} parent=23 // pred_fallthru
          _
      $region24: #{tpu_custom_call.1} parent=5 // pred_fallthru
        _
      %p254 = scmp.le.s32.totalorder 1, %s24
      %p255 = scmp.lt.s32.totalorder %s24, 4
      %p256 = pnand %p254, %p255
      %p257 = pneg %p256
      // Predicated region
      $region33: #{tpu_custom_call.1} parent=5 // pred_check
        _
      $region34: #{tpu_custom_call.1} parent=5 // pred_check_branch
        %259 = sbr.rel (%p256) target = $region36
      $region35: #{tpu_custom_call.1} parent=5 // pred_region
        %s260 = ssub.s32 %s24, 1
        %s261 = sand.u32 %s37, 1
        %s262 = scalar_lea.sflag [#allocation4], %s261
        %s263 = sand.u32 %s37, 1
        %s264 = smul.addr %s263, 96
        %s265 = scalar_lea.vmem [#allocation3], %s264
        // Predicated region
        $region37: #{tpu_custom_call.1} parent=35 // pred_check
          %p266 = pneg %p50
        $region38: #{tpu_custom_call.1} parent=35 // pred_check_branch
          %268 = sbr.rel (%p266) target = $region40
        $region39: #{tpu_custom_call.1} parent=35 // pred_region
          %269 = dma.done %s262, 1536
        $region40: #{tpu_custom_call.1} parent=35 // pred_fallthru
          _
        %s270 = sand.u32 %s29, 1
        %s271 = scalar_lea.sflag [#allocation7], %s270
        %s272 = sand.u32 %s65, 1
        %s273 = smul.addr %s272, 96
        %s274 = scalar_lea.vmem [#allocation6], %s273
        // Predicated region
        $region41: #{tpu_custom_call.1} parent=35 // pred_check
          %p275 = pneg %p78
        $region42: #{tpu_custom_call.1} parent=35 // pred_check_branch
          %277 = sbr.rel (%p275) target = $region44
        $region43: #{tpu_custom_call.1} parent=35 // pred_region
          %278 = dma.done %s271, 1536
        $region44: #{tpu_custom_call.1} parent=35 // pred_fallthru
          _
        // Predicated region
        $region45: #{tpu_custom_call.1} parent=35 // pred_check
          %p279 = pneg %p99
        $region46: #{tpu_custom_call.1} parent=35 // pred_check_branch
          %281 = sbr.rel (%p279) target = $region48
        $region47: #{tpu_custom_call.1} parent=35 // pred_region
          %282 = dma.done [#allocation7], 12288
        $region48: #{tpu_custom_call.1} parent=35 // pred_fallthru
          _
        %s283 = sand.u32 %s37, 1
        %s284 = scalar_lea.sflag [#allocation4], %s283
        %s285 = sand.u32 %s37, 1
        %s286 = smul.addr %s285, 96
        %s287 = scalar_lea.vmem [#allocation3], %s286
        %p288 = pneg %p50
        %p289 = pneg %p47
        %s290 = sand.u32 %s29, 1
        %s291 = scalar_lea.sflag [#allocation7], %s290
        %s292 = sand.u32 %s65, 1
        %s293 = smul.addr %s292, 96
        %s294 = scalar_lea.vmem [#allocation6], %s293
        %p295 = pneg %p78
        %p296 = pneg %p75
        %p297 = pneg %p99
        %p298 = pneg %p96
        %p299 = pneg %p120
        %p300 = pneg %p117
        %p301 = pneg %p146
        %p302 = pneg %p143
        %s303 = sand.u32 %s133, 1
        %s304 = scalar_lea.sflag [#allocation5], %s303
        %s305 = sand.u32 %s133, 1
        %s306 = smul.addr %s305, 32
        %s307 = scalar_lea.vmem [#allocation9], %s306
        %p308 = pneg %p174
        %p309 = pneg %p171
        %s310 = sand.u32 %s161, 1
        %s311 = scalar_lea.sflag [#allocation11], %s310
        %s312 = sand.u32 %s161, 1
        %s313 = smul.addr %s312, 32
        %s314 = scalar_lea.vmem [#allocation10], %s313
        %s315 = smul.u32 4, %s29
        %s316 = ssub.s32 2, %s29
        %s317 = smul.u32 4, %s316
        %s318 = smul.u32 4, %s29
        %s319 = ssub.s32 2, %s29
        %s320 = smul.u32 4, %s319
        %p321 = scmp.eq.s32.totalorder %s29, 0
        // Predicated region
        $region49: #{tpu_custom_call.1} parent=35 // pred_check
          %p322 = pneg %p321
        $region50: #{tpu_custom_call.1} parent=35 // pred_check_branch
          %324 = sbr.rel (%p322) target = $region52
        $region51: #{tpu_custom_call.1} parent=35 // pred_region
          %325 = vst [vmem:[#allocation2] sm:$0xff] 0.0
          %326 = vst [vmem:[#allocation2 + $0x8] sm:$0xff] 0.0
        $region52: #{tpu_custom_call.1} parent=35 // pred_fallthru
          _
        %v327 = vld [vmem:[#allocation8] sm:$0xff]
        %v328 = vld [vmem:[#allocation8 + $0x8] sm:$0xff]
        %v329 = vld [vmem:[#allocation8 + $0x10] sm:$0xff]
        %v330 = vld [vmem:[#allocation8 + $0x18] sm:$0xff]
        %v331 = vld [vmem:[#allocation8 + $0x20] sm:$0xff]
        %v332 = vld [vmem:[#allocation8 + $0x28] sm:$0xff]
        %v333 = vld [vmem:[#allocation8 + $0x30] sm:$0xff]
        %v334 = vld [vmem:[#allocation8 + $0x38] sm:$0xff]
        %v335 = vld [vmem:[#allocation8 + $0x40] sm:$0xff]
        %v336 = vld [vmem:[#allocation8 + $0x48] sm:$0xff]
        %v337 = vld [vmem:[#allocation8 + $0x50] sm:$0xff]
        %v338 = vld [vmem:[#allocation8 + $0x58] sm:$0xff]
        %v339 = vld [vmem:[#allocation8 + $0x60] sm:$0xff]
        %v340 = vld [vmem:[#allocation8 + $0x68] sm:$0xff]
        %v341 = vld [vmem:[#allocation8 + $0x70] sm:$0xff]
        %v342 = vld [vmem:[#allocation8 + $0x78] sm:$0xff]
        %v343 = vld [vmem:[#allocation8 + $0x80] sm:$0xff]
        %v344 = vld [vmem:[#allocation8 + $0x88] sm:$0xff]
        %v345 = vld [vmem:[#allocation8 + $0x90] sm:$0xff]
        %v346 = vld [vmem:[#allocation8 + $0x98] sm:$0xff]
        %v347 = vld [vmem:[#allocation8 + $0xa0] sm:$0xff]
        %v348 = vld [vmem:[#allocation8 + $0xa8] sm:$0xff]
        %v349 = vld [vmem:[#allocation8 + $0xb0] sm:$0xff]
        %v350 = vld [vmem:[#allocation8 + $0xb8] sm:$0xff]
        %v351 = vld [vmem:[#allocation8 + $0xc0] sm:$0xff]
        %v352 = vld [vmem:[#allocation8 + $0xc8] sm:$0xff]
        %v353 = vld [vmem:[#allocation8 + $0xd0] sm:$0xff]
        %v354 = vld [vmem:[#allocation8 + $0xd8] sm:$0xff]
        %v355 = vld [vmem:[#allocation8 + $0xe0] sm:$0xff]
        %v356 = vld [vmem:[#allocation8 + $0xe8] sm:$0xff]
        %v357 = vld [vmem:[#allocation8 + $0xf0] sm:$0xff]
        %v358 = vld [vmem:[#allocation8 + $0xf8] sm:$0xff]
        %v359 = vld [vmem:[#allocation8 + $0x100] sm:$0xff]
        %v360 = vld [vmem:[#allocation8 + $0x108] sm:$0xff]
        %v361 = vld [vmem:[#allocation8 + $0x110] sm:$0xff]
        %v362 = vld [vmem:[#allocation8 + $0x118] sm:$0xff]
        %v363 = vld [vmem:[#allocation8 + $0x120] sm:$0xff]
        %v364 = vld [vmem:[#allocation8 + $0x128] sm:$0xff]
        %v365 = vld [vmem:[#allocation8 + $0x130] sm:$0xff]
        %v366 = vld [vmem:[#allocation8 + $0x138] sm:$0xff]
        %v367 = vld [vmem:[#allocation8 + $0x140] sm:$0xff]
        %v368 = vld [vmem:[#allocation8 + $0x148] sm:$0xff]
        %v369 = vld [vmem:[#allocation8 + $0x150] sm:$0xff]
        %v370 = vld [vmem:[#allocation8 + $0x158] sm:$0xff]
        %v371 = vld [vmem:[#allocation8 + $0x160] sm:$0xff]
        %v372 = vld [vmem:[#allocation8 + $0x168] sm:$0xff]
        %v373 = vld [vmem:[#allocation8 + $0x170] sm:$0xff]
        %v374 = vld [vmem:[#allocation8 + $0x178] sm:$0xff]
        %s375 = scalar_lea.vmem [#allocation8], 384
        %v376 = vld [vmem:[%s375] sm:$0xff]
        %v377 = vld [vmem:[%s375 + $0x8] sm:$0xff]
        %v378 = vld [vmem:[%s375 + $0x10] sm:$0xff]
        %v379 = vld [vmem:[%s375 + $0x18] sm:$0xff]
        %v380 = vld [vmem:[%s375 + $0x20] sm:$0xff]
        %v381 = vld [vmem:[%s375 + $0x28] sm:$0xff]
        %v382 = vld [vmem:[%s375 + $0x30] sm:$0xff]
        %v383 = vld [vmem:[%s375 + $0x38] sm:$0xff]
        %v384 = vld [vmem:[%s375 + $0x40] sm:$0xff]
        %v385 = vld [vmem:[%s375 + $0x48] sm:$0xff]
        %v386 = vld [vmem:[%s375 + $0x50] sm:$0xff]
        %v387 = vld [vmem:[%s375 + $0x58] sm:$0xff]
        %v388 = vld [vmem:[%s375 + $0x60] sm:$0xff]
        %v389 = vld [vmem:[%s375 + $0x68] sm:$0xff]
        %v390 = vld [vmem:[%s375 + $0x70] sm:$0xff]
        %v391 = vld [vmem:[%s375 + $0x78] sm:$0xff]
        %v392 = vld [vmem:[%s375 + $0x80] sm:$0xff]
        %v393 = vld [vmem:[%s375 + $0x88] sm:$0xff]
        %v394 = vld [vmem:[%s375 + $0x90] sm:$0xff]
        %v395 = vld [vmem:[%s375 + $0x98] sm:$0xff]
        %v396 = vld [vmem:[%s375 + $0xa0] sm:$0xff]
        %v397 = vld [vmem:[%s375 + $0xa8] sm:$0xff]
        %v398 = vld [vmem:[%s375 + $0xb0] sm:$0xff]
        %v399 = vld [vmem:[%s375 + $0xb8] sm:$0xff]
        %v400 = vld [vmem:[%s375 + $0xc0] sm:$0xff]
        %v401 = vld [vmem:[%s375 + $0xc8] sm:$0xff]
        %v402 = vld [vmem:[%s375 + $0xd0] sm:$0xff]
        %v403 = vld [vmem:[%s375 + $0xd8] sm:$0xff]
        %v404 = vld [vmem:[%s375 + $0xe0] sm:$0xff]
        %v405 = vld [vmem:[%s375 + $0xe8] sm:$0xff]
        %v406 = vld [vmem:[%s375 + $0xf0] sm:$0xff]
        %v407 = vld [vmem:[%s375 + $0xf8] sm:$0xff]
        %v408 = vld [vmem:[%s375 + $0x100] sm:$0xff]
        %v409 = vld [vmem:[%s375 + $0x108] sm:$0xff]
        %v410 = vld [vmem:[%s375 + $0x110] sm:$0xff]
        %v411 = vld [vmem:[%s375 + $0x118] sm:$0xff]
        %v412 = vld [vmem:[%s375 + $0x120] sm:$0xff]
        %v413 = vld [vmem:[%s375 + $0x128] sm:$0xff]
        %v414 = vld [vmem:[%s375 + $0x130] sm:$0xff]
        %v415 = vld [vmem:[%s375 + $0x138] sm:$0xff]
        %v416 = vld [vmem:[%s375 + $0x140] sm:$0xff]
        %v417 = vld [vmem:[%s375 + $0x148] sm:$0xff]
        %v418 = vld [vmem:[%s375 + $0x150] sm:$0xff]
        %v419 = vld [vmem:[%s375 + $0x158] sm:$0xff]
        %v420 = vld [vmem:[%s375 + $0x160] sm:$0xff]
        %v421 = vld [vmem:[%s375 + $0x168] sm:$0xff]
        %v422 = vld [vmem:[%s375 + $0x170] sm:$0xff]
        %v423 = vld [vmem:[%s375 + $0x178] sm:$0xff]
        %v424 = vld [vmem:[%s3] sm:$0x1]
        %v426 = vlaneseq
        %v427 = vshrl.u32 %v426, 7
        %v428 = vsub.s32 0, %v427
        %v429 = vrot.slane %v424, %v428
        %s431 = scalar_lea.vmem %s3, 1
        %v432 = vld [vmem:[%s431] sm:$0x1]
        %v434 = vlaneseq
        %v435 = vshrl.u32 %v434, 7
        %v436 = vsub.s32 0, %v435
        %v437 = vrot.slane %v432, %v436
        %v439 = vld [vmem:[#allocation2] sm:$0xff]
        %440 = vmatprep.subr.mxu0 %v373
        %441 = vmatpush1.msra.mxu0 %v372
        %442 = vmatprep.subr.mxu0 %v370
        %443 = vmatpush1.msra.mxu0 %v369
        %444 = vmatprep.subr.mxu0 %v367
        %445 = vmatpush1.msra.mxu0 %v366
        %446 = vmatprep.subr.mxu0 %v364
        %447 = vmatpush1.msra.mxu0 %v363
        %448 = vmatprep.subr.mxu0 %v361
        %449 = vmatpush1.msra.mxu0 %v360
        %450 = vmatprep.subr.mxu0 %v358
        %451 = vmatpush1.msra.mxu0 %v357
        %452 = vmatprep.subr.mxu0 %v355
        %453 = vmatpush1.msra.mxu0 %v354
        %454 = vmatprep.subr.mxu0 %v352
        %455 = vmatpush1.msra.mxu0 %v351
        %456 = vmatprep.subr.mxu0 %v349
        %457 = vmatpush1.msra.mxu0 %v348
        %458 = vmatprep.subr.mxu0 %v346
        %459 = vmatpush1.msra.mxu0 %v345
        %460 = vmatprep.subr.mxu0 %v343
        %461 = vmatpush1.msra.mxu0 %v342
        %462 = vmatprep.subr.mxu0 %v340
        %463 = vmatpush1.msra.mxu0 %v339
        %464 = vmatprep.subr.mxu0 %v337
        %465 = vmatpush1.msra.mxu0 %v336
        %466 = vmatprep.subr.mxu0 %v334
        %467 = vmatpush1.msra.mxu0 %v333
        %468 = vmatprep.subr.mxu0 %v331
        %469 = vmatpush1.msra.mxu0 %v330
        %470 = vmatprep.subr.mxu0 %v328
        %471 = vmatpush1.msra.mxu0 %v327
        %472 = vmatprep.subr.mxu0 0.0
        %473 = vmatpush2.msra.mxu0 0.0
        %474 = vmatprep.subr.mxu0 0.0
        %475 = vmatpush2.msra.mxu0 0.0
        %476 = vmatprep.subr.mxu0 0.0
        %477 = vmatpush2.msra.mxu0 0.0
        %478 = vmatprep.subr.mxu0 0.0
        %479 = vmatpush2.msra.mxu0 0.0
        %480 = vmatprep.subr.mxu0 0.0
        %481 = vmatpush2.msra.mxu0 0.0
        %482 = vmatprep.subr.mxu0 0.0
        %483 = vmatpush2.msra.mxu0 0.0
        %484 = vmatprep.subr.mxu0 0.0
        %485 = vmatpush2.msra.mxu0 0.0
        %486 = vmatprep.subr.mxu0 0.0
        %487 = vmatpush2.msra.mxu0 0.0
        %488 = vmatprep.subr.mxu0 0.0
        %489 = vmatpush2.msra.mxu0 0.0
        %490 = vmatprep.subr.mxu0 0.0
        %491 = vmatpush2.msra.mxu0 0.0
        %492 = vmatprep.subr.mxu0 0.0
        %493 = vmatpush2.msra.mxu0 0.0
        %494 = vmatprep.subr.mxu0 0.0
        %495 = vmatpush2.msra.mxu0 0.0
        %496 = vmatprep.subr.mxu0 0.0
        %497 = vmatpush2.msra.mxu0 0.0
        %498 = vmatprep.subr.mxu0 0.0
        %499 = vmatpush2.msra.mxu0 0.0
        %500 = vmatprep.subr.mxu0 0.0
        %501 = vmatpush2.msra.mxu0 0.0
        %502 = vmatprep.subr.mxu0 0.0
        %503 = vmatpush2.msra.mxu0 0.0
        %504 = vmatprep.mubr.f32.mxu0 0.0
        %505 = vmatmul.mubr.f32.gmra.mxu0 %v439
        %v506 = vpop.f32.mrf.mxu0
        %v507 = vadd.f32 0.0, %v506
        %v508 = vpop.f32.mrf.mxu0
        %v509 = vadd.f32 0.0, %v508
        %510 = vdwg.mxu0
        %511 = vmatprep.subr.mxu0 0.0
        %512 = vmatpush1.msra.mxu0 %v374
        %513 = vmatprep.subr.mxu0 0.0
        %514 = vmatpush1.msra.mxu0 %v371
        %515 = vmatprep.subr.mxu0 0.0
        %516 = vmatpush1.msra.mxu0 %v368
        %517 = vmatprep.subr.mxu0 0.0
        %518 = vmatpush1.msra.mxu0 %v365
        %519 = vmatprep.subr.mxu0 0.0
        %520 = vmatpush1.msra.mxu0 %v362
        %521 = vmatprep.subr.mxu0 0.0
        %522 = vmatpush1.msra.mxu0 %v359
        %523 = vmatprep.subr.mxu0 0.0
        %524 = vmatpush1.msra.mxu0 %v356
        %525 = vmatprep.subr.mxu0 0.0
        %526 = vmatpush1.msra.mxu0 %v353
        %527 = vmatprep.subr.mxu0 0.0
        %528 = vmatpush1.msra.mxu0 %v350
        %529 = vmatprep.subr.mxu0 0.0
        %530 = vmatpush1.msra.mxu0 %v347
        %531 = vmatprep.subr.mxu0 0.0
        %532 = vmatpush1.msra.mxu0 %v344
        %533 = vmatprep.subr.mxu0 0.0
        %534 = vmatpush1.msra.mxu0 %v341
        %535 = vmatprep.subr.mxu0 0.0
        %536 = vmatpush1.msra.mxu0 %v338
        %537 = vmatprep.subr.mxu0 0.0
        %538 = vmatpush1.msra.mxu0 %v335
        %539 = vmatprep.subr.mxu0 0.0
        %540 = vmatpush1.msra.mxu0 %v332
        %541 = vmatprep.subr.mxu0 0.0
        %542 = vmatpush1.msra.mxu0 %v329
        %543 = vmatprep.subr.mxu0 0.0
        %544 = vmatpush2.msra.mxu0 0.0
        %545 = vmatprep.subr.mxu0 0.0
        %546 = vmatpush2.msra.mxu0 0.0
        %547 = vmatprep.subr.mxu0 0.0
        %548 = vmatpush2.msra.mxu0 0.0
        %549 = vmatprep.subr.mxu0 0.0
        %550 = vmatpush2.msra.mxu0 0.0
        %551 = vmatprep.subr.mxu0 0.0
        %552 = vmatpush2.msra.mxu0 0.0
        %553 = vmatprep.subr.mxu0 0.0
        %554 = vmatpush2.msra.mxu0 0.0
        %555 = vmatprep.subr.mxu0 0.0
        %556 = vmatpush2.msra.mxu0 0.0
        %557 = vmatprep.subr.mxu0 0.0
        %558 = vmatpush2.msra.mxu0 0.0
        %559 = vmatprep.subr.mxu0 0.0
        %560 = vmatpush2.msra.mxu0 0.0
        %561 = vmatprep.subr.mxu0 0.0
        %562 = vmatpush2.msra.mxu0 0.0
        %563 = vmatprep.subr.mxu0 0.0
        %564 = vmatpush2.msra.mxu0 0.0
        %565 = vmatprep.subr.mxu0 0.0
        %566 = vmatpush2.msra.mxu0 0.0
        %567 = vmatprep.subr.mxu0 0.0
        %568 = vmatpush2.msra.mxu0 0.0
        %569 = vmatprep.subr.mxu0 0.0
        %570 = vmatpush2.msra.mxu0 0.0
        %571 = vmatprep.subr.mxu0 0.0
        %572 = vmatpush2.msra.mxu0 0.0
        %573 = vmatprep.subr.mxu0 0.0
        %574 = vmatpush2.msra.mxu0 0.0
        %575 = vmatprep.mubr.f32.mxu0 0.0
        %576 = vmatmul.mubr.f32.gmra.mxu0 %v439
        %v577 = vpop.f32.mrf.mxu0
        %v578 = vadd.f32 0.0, %v577
        %v579 = vpop.f32.mrf.mxu0
        %580 = vdwg.mxu0
        %v581 = vld [vmem:[%s265] sm:$0xff]
        %v582 = vld [vmem:[%s265 + $0x8] sm:$0xff]
        %v583 = vld [vmem:[%s265 + $0x10] sm:$0xff]
        %s584 = scalar_lea.vmem [#allocation2], 8
        %v585 = vld [vmem:[%s584] sm:$0xff]
        %586 = vmatprep.subr.mxu0 %v422
        %587 = vmatpush1.msra.mxu0 %v421
        %588 = vmatprep.subr.mxu0 %v419
        %589 = vmatpush1.msra.mxu0 %v418
        %590 = vmatprep.subr.mxu0 %v416
        %591 = vmatpush1.msra.mxu0 %v415
        %592 = vmatprep.subr.mxu0 %v413
        %593 = vmatpush1.msra.mxu0 %v412
        %594 = vmatprep.subr.mxu0 %v410
        %595 = vmatpush1.msra.mxu0 %v409
        %596 = vmatprep.subr.mxu0 %v407
        %597 = vmatpush1.msra.mxu0 %v406
        %598 = vmatprep.subr.mxu0 %v404
        %599 = vmatpush1.msra.mxu0 %v403
        %600 = vmatprep.subr.mxu0 %v401
        %601 = vmatpush1.msra.mxu0 %v400
        %602 = vmatprep.subr.mxu0 %v398
        %603 = vmatpush1.msra.mxu0 %v397
        %604 = vmatprep.subr.mxu0 %v395
        %605 = vmatpush1.msra.mxu0 %v394
        %606 = vmatprep.subr.mxu0 %v392
        %607 = vmatpush1.msra.mxu0 %v391
        %608 = vmatprep.subr.mxu0 %v389
        %609 = vmatpush1.msra.mxu0 %v388
        %610 = vmatprep.subr.mxu0 %v386
        %611 = vmatpush1.msra.mxu0 %v385
        %612 = vmatprep.subr.mxu0 %v383
        %613 = vmatpush1.msra.mxu0 %v382
        %614 = vmatprep.subr.mxu0 %v380
        %615 = vmatpush1.msra.mxu0 %v379
        %616 = vmatprep.subr.mxu0 %v377
        %617 = vmatpush1.msra.mxu0 %v376
        %618 = vmatprep.subr.mxu0 0.0
        %619 = vmatpush2.msra.mxu0 0.0
        %620 = vmatprep.subr.mxu0 0.0
        %621 = vmatpush2.msra.mxu0 0.0
        %622 = vmatprep.subr.mxu0 0.0
        %623 = vmatpush2.msra.mxu0 0.0
        %624 = vmatprep.subr.mxu0 0.0
        %625 = vmatpush2.msra.mxu0 0.0
        %626 = vmatprep.subr.mxu0 0.0
        %627 = vmatpush2.msra.mxu0 0.0
        %628 = vmatprep.subr.mxu0 0.0
        %629 = vmatpush2.msra.mxu0 0.0
        %630 = vmatprep.subr.mxu0 0.0
        %631 = vmatpush2.msra.mxu0 0.0
        %632 = vmatprep.subr.mxu0 0.0
        %633 = vmatpush2.msra.mxu0 0.0
        %634 = vmatprep.subr.mxu0 0.0
        %635 = vmatpush2.msra.mxu0 0.0
        %636 = vmatprep.subr.mxu0 0.0
        %637 = vmatpush2.msra.mxu0 0.0
        %638 = vmatprep.subr.mxu0 0.0
        %639 = vmatpush2.msra.mxu0 0.0
        %640 = vmatprep.subr.mxu0 0.0
        %641 = vmatpush2.msra.mxu0 0.0
        %642 = vmatprep.subr.mxu0 0.0
        %643 = vmatpush2.msra.mxu0 0.0
        %644 = vmatprep.subr.mxu0 0.0
        %645 = vmatpush2.msra.mxu0 0.0
        %646 = vmatprep.subr.mxu0 0.0
        %647 = vmatpush2.msra.mxu0 0.0
        %648 = vmatprep.subr.mxu0 0.0
        %649 = vmatpush2.msra.mxu0 0.0
        %650 = vmatprep.mubr.f32.mxu0 0.0
        %651 = vmatmul.mubr.f32.gmra.mxu0 %v585
        %v652 = vpop.f32.mrf.mxu0
        %v653 = vadd.f32 0.0, %v652
        %v654 = vpop.f32.mrf.mxu0
        %v655 = vadd.f32 0.0, %v654
        %656 = vdwg.mxu0
        %657 = vmatprep.subr.mxu0 0.0
        %658 = vmatpush1.msra.mxu0 %v423
        %659 = vmatprep.subr.mxu0 0.0
        %660 = vmatpush1.msra.mxu0 %v420
        %661 = vmatprep.subr.mxu0 0.0
        %662 = vmatpush1.msra.mxu0 %v417
        %663 = vmatprep.subr.mxu0 0.0
        %664 = vmatpush1.msra.mxu0 %v414
        %665 = vmatprep.subr.mxu0 0.0
        %666 = vmatpush1.msra.mxu0 %v411
        %667 = vmatprep.subr.mxu0 0.0
        %668 = vmatpush1.msra.mxu0 %v408
        %669 = vmatprep.subr.mxu0 0.0
        %670 = vmatpush1.msra.mxu0 %v405
        %671 = vmatprep.subr.mxu0 0.0
        %672 = vmatpush1.msra.mxu0 %v402
        %673 = vmatprep.subr.mxu0 0.0
        %674 = vmatpush1.msra.mxu0 %v399
        %675 = vmatprep.subr.mxu0 0.0
        %676 = vmatpush1.msra.mxu0 %v396
        %677 = vmatprep.subr.mxu0 0.0
        %678 = vmatpush1.msra.mxu0 %v393
        %679 = vmatprep.subr.mxu0 0.0
        %680 = vmatpush1.msra.mxu0 %v390
        %681 = vmatprep.subr.mxu0 0.0
        %682 = vmatpush1.msra.mxu0 %v387
        %683 = vmatprep.subr.mxu0 0.0
        %684 = vmatpush1.msra.mxu0 %v384
        %685 = vmatprep.subr.mxu0 0.0
        %686 = vmatpush1.msra.mxu0 %v381
        %687 = vmatprep.subr.mxu0 0.0
        %688 = vmatpush1.msra.mxu0 %v378
        %689 = vmatprep.subr.mxu0 0.0
        %690 = vmatpush2.msra.mxu0 0.0
        %691 = vmatprep.subr.mxu0 0.0
        %692 = vmatpush2.msra.mxu0 0.0
        %693 = vmatprep.subr.mxu0 0.0
        %694 = vmatpush2.msra.mxu0 0.0
        %695 = vmatprep.subr.mxu0 0.0
        %696 = vmatpush2.msra.mxu0 0.0
        %697 = vmatprep.subr.mxu0 0.0
        %698 = vmatpush2.msra.mxu0 0.0
        %699 = vmatprep.subr.mxu0 0.0
        %700 = vmatpush2.msra.mxu0 0.0
        %701 = vmatprep.subr.mxu0 0.0
        %702 = vmatpush2.msra.mxu0 0.0
        %703 = vmatprep.subr.mxu0 0.0
        %704 = vmatpush2.msra.mxu0 0.0
        %705 = vmatprep.subr.mxu0 0.0
        %706 = vmatpush2.msra.mxu0 0.0
        %707 = vmatprep.subr.mxu0 0.0
        %708 = vmatpush2.msra.mxu0 0.0
        %709 = vmatprep.subr.mxu0 0.0
        %710 = vmatpush2.msra.mxu0 0.0
        %711 = vmatprep.subr.mxu0 0.0
        %712 = vmatpush2.msra.mxu0 0.0
        %713 = vmatprep.subr.mxu0 0.0
        %714 = vmatpush2.msra.mxu0 0.0
        %715 = vmatprep.subr.mxu0 0.0
        %716 = vmatpush2.msra.mxu0 0.0
        %717 = vmatprep.subr.mxu0 0.0
        %718 = vmatpush2.msra.mxu0 0.0
        %719 = vmatprep.subr.mxu0 0.0
        %720 = vmatpush2.msra.mxu0 0.0
        %721 = vmatprep.mubr.f32.mxu0 0.0
        %722 = vmatmul.mubr.f32.gmra.mxu0 %v585
        %v723 = vpop.f32.mrf.mxu0
        %v724 = vadd.f32 0.0, %v723
        %v725 = vpop.f32.mrf.mxu0
        %726 = vdwg.mxu0
        %s727 = scalar_lea.vmem %s274, 72 [#allocation6]
        %v728 = vld [vmem:[%s727] sm:$0xff]
        %v729 = vld [vmem:[%s727 + $0x8] sm:$0xff]
        %v730 = vld [vmem:[%s727 + $0x10] sm:$0xff]
        %v731 = vadd.f32 %v581, %v507
        %v732 = vxor.u32 %v731, 2147483648
        %v733 = vmul.f32 %v732, 1.442695
        %v734 = vpow.pop %v733
        %v735 = vadd.f32 %v734, 1.0
        %v736 = vrcp.pop %v735
        %v737 = vmul.f32 1.0, %v736
        %v738 = vadd.f32 %v582, %v509
        %v739 = vxor.u32 %v738, 2147483648
        %v740 = vmul.f32 %v739, 1.442695
        %v741 = vpow.pop %v740
        %v742 = vadd.f32 %v741, 1.0
        %v743 = vrcp.pop %v742
        %v744 = vmul.f32 1.0, %v743
        %v745 = vadd.f32 %v578, %v429
        %v746 = vmul.f32 %v737, %v745
        %v747 = vadd.f32 %v583, %v746
        %v748 = vtanh.pop %v747
        %v749 = vsub.f32 1.0, %v744
        %v750 = vmul.f32 %v749, %v748
        %v751 = vmul.f32 %v744, %v439
        %v752 = vadd.f32 %v750, %v751
        %s753 = smul.u32 %s29, 4
        %p754 = scmp.lt.s32.totalorder %s753, 10
        %s755 = scalar_select %p754, 1, 0
        %s756 = scvt.s32.f32 %s755
        %v757 = vstv %s756
        %v758 = vmul.f32 %v757, %v752
        %s759 = ssub.f32 1.0, %s756
        %v760 = vstv %s759
        %v761 = vmul.f32 %v760, %v439
        %v762 = vadd.f32 %v758, %v761
        %763 = vst [vmem:[#allocation2] sm:$0xff] %v762
        %764 = vst [vmem:[%s307] sm:$0xff] %v762
        %v765 = vadd.f32 %v728, %v653
        %v766 = vxor.u32 %v765, 2147483648
        %v767 = vmul.f32 %v766, 1.442695
        %v768 = vpow.pop %v767
        %v769 = vadd.f32 %v768, 1.0
        %v770 = vrcp.pop %v769
        %v771 = vmul.f32 1.0, %v770
        %v772 = vadd.f32 %v729, %v655
        %v773 = vxor.u32 %v772, 2147483648
        %v774 = vmul.f32 %v773, 1.442695
        %v775 = vpow.pop %v774
        %v776 = vadd.f32 %v775, 1.0
        %v777 = vrcp.pop %v776
        %v778 = vmul.f32 1.0, %v777
        %v779 = vadd.f32 %v724, %v437
        %v780 = vmul.f32 %v771, %v779
        %v781 = vadd.f32 %v730, %v780
        %v782 = vtanh.pop %v781
        %v783 = vsub.f32 1.0, %v778
        %v784 = vmul.f32 %v783, %v782
        %v785 = vmul.f32 %v778, %v585
        %v786 = vadd.f32 %v784, %v785
        %s787 = ssub.s32 11, %s753
        %p788 = scmp.lt.s32.totalorder %s787, 10
        %s789 = scalar_select %p788, 1, 0
        %s790 = scvt.s32.f32 %s789
        %v791 = vstv %s790
        %v792 = vmul.f32 %v791, %v786
        %s793 = ssub.f32 1.0, %s790
        %v794 = vstv %s793
        %v795 = vmul.f32 %v794, %v585
        %v796 = vadd.f32 %v792, %v795
        %797 = vst [vmem:[%s584] sm:$0xff] %v796
        %s798 = scalar_lea.vmem %s314, 24 [#allocation10]
        %799 = vst [vmem:[%s798] sm:$0xff] %v796
        %v800 = vld [vmem:[#allocation2] sm:$0xff]
        %801 = vmatprep.subr.mxu0 %v373
        %802 = vmatpush1.msra.mxu0 %v372
        %803 = vmatprep.subr.mxu0 %v370
        %804 = vmatpush1.msra.mxu0 %v369
        %805 = vmatprep.subr.mxu0 %v367
        %806 = vmatpush1.msra.mxu0 %v366
        %807 = vmatprep.subr.mxu0 %v364
        %808 = vmatpush1.msra.mxu0 %v363
        %809 = vmatprep.subr.mxu0 %v361
        %810 = vmatpush1.msra.mxu0 %v360
        %811 = vmatprep.subr.mxu0 %v358
        %812 = vmatpush1.msra.mxu0 %v357
        %813 = vmatprep.subr.mxu0 %v355
        %814 = vmatpush1.msra.mxu0 %v354
        %815 = vmatprep.subr.mxu0 %v352
        %816 = vmatpush1.msra.mxu0 %v351
        %817 = vmatprep.subr.mxu0 %v349
        %818 = vmatpush1.msra.mxu0 %v348
        %819 = vmatprep.subr.mxu0 %v346
        %820 = vmatpush1.msra.mxu0 %v345
        %821 = vmatprep.subr.mxu0 %v343
        %822 = vmatpush1.msra.mxu0 %v342
        %823 = vmatprep.subr.mxu0 %v340
        %824 = vmatpush1.msra.mxu0 %v339
        %825 = vmatprep.subr.mxu0 %v337
        %826 = vmatpush1.msra.mxu0 %v336
        %827 = vmatprep.subr.mxu0 %v334
        %828 = vmatpush1.msra.mxu0 %v333
        %829 = vmatprep.subr.mxu0 %v331
        %830 = vmatpush1.msra.mxu0 %v330
        %831 = vmatprep.subr.mxu0 %v328
        %832 = vmatpush1.msra.mxu0 %v327
        %833 = vmatprep.subr.mxu0 0.0
        %834 = vmatpush2.msra.mxu0 0.0
        %835 = vmatprep.subr.mxu0 0.0
        %836 = vmatpush2.msra.mxu0 0.0
        %837 = vmatprep.subr.mxu0 0.0
        %838 = vmatpush2.msra.mxu0 0.0
        %839 = vmatprep.subr.mxu0 0.0
        %840 = vmatpush2.msra.mxu0 0.0
        %841 = vmatprep.subr.mxu0 0.0
        %842 = vmatpush2.msra.mxu0 0.0
        %843 = vmatprep.subr.mxu0 0.0
        %844 = vmatpush2.msra.mxu0 0.0
        %845 = vmatprep.subr.mxu0 0.0
        %846 = vmatpush2.msra.mxu0 0.0
        %847 = vmatprep.subr.mxu0 0.0
        %848 = vmatpush2.msra.mxu0 0.0
        %849 = vmatprep.subr.mxu0 0.0
        %850 = vmatpush2.msra.mxu0 0.0
        %851 = vmatprep.subr.mxu0 0.0
        %852 = vmatpush2.msra.mxu0 0.0
        %853 = vmatprep.subr.mxu0 0.0
        %854 = vmatpush2.msra.mxu0 0.0
        %855 = vmatprep.subr.mxu0 0.0
        %856 = vmatpush2.msra.mxu0 0.0
        %857 = vmatprep.subr.mxu0 0.0
        %858 = vmatpush2.msra.mxu0 0.0
        %859 = vmatprep.subr.mxu0 0.0
        %860 = vmatpush2.msra.mxu0 0.0
        %861 = vmatprep.subr.mxu0 0.0
        %862 = vmatpush2.msra.mxu0 0.0
        %863 = vmatprep.subr.mxu0 0.0
        %864 = vmatpush2.msra.mxu0 0.0
        %865 = vmatprep.mubr.f32.mxu0 0.0
        %866 = vmatmul.mubr.f32.gmra.mxu0 %v800
        %v867 = vpop.f32.mrf.mxu0
        %v868 = vadd.f32 0.0, %v867
        %v869 = vpop.f32.mrf.mxu0
        %v870 = vadd.f32 0.0, %v869
        %871 = vdwg.mxu0
        %872 = vmatprep.subr.mxu0 0.0
        %873 = vmatpush1.msra.mxu0 %v374
        %874 = vmatprep.subr.mxu0 0.0
        %875 = vmatpush1.msra.mxu0 %v371
        %876 = vmatprep.subr.mxu0 0.0
        %877 = vmatpush1.msra.mxu0 %v368
        %878 = vmatprep.subr.mxu0 0.0
        %879 = vmatpush1.msra.mxu0 %v365
        %880 = vmatprep.subr.mxu0 0.0
        %881 = vmatpush1.msra.mxu0 %v362
        %882 = vmatprep.subr.mxu0 0.0
        %883 = vmatpush1.msra.mxu0 %v359
        %884 = vmatprep.subr.mxu0 0.0
        %885 = vmatpush1.msra.mxu0 %v356
        %886 = vmatprep.subr.mxu0 0.0
        %887 = vmatpush1.msra.mxu0 %v353
        %888 = vmatprep.subr.mxu0 0.0
        %889 = vmatpush1.msra.mxu0 %v350
        %890 = vmatprep.subr.mxu0 0.0
        %891 = vmatpush1.msra.mxu0 %v347
        %892 = vmatprep.subr.mxu0 0.0
        %893 = vmatpush1.msra.mxu0 %v344
        %894 = vmatprep.subr.mxu0 0.0
        %895 = vmatpush1.msra.mxu0 %v341
        %896 = vmatprep.subr.mxu0 0.0
        %897 = vmatpush1.msra.mxu0 %v338
        %898 = vmatprep.subr.mxu0 0.0
        %899 = vmatpush1.msra.mxu0 %v335
        %900 = vmatprep.subr.mxu0 0.0
        %901 = vmatpush1.msra.mxu0 %v332
        %902 = vmatprep.subr.mxu0 0.0
        %903 = vmatpush1.msra.mxu0 %v329
        %904 = vmatprep.subr.mxu0 0.0
        %905 = vmatpush2.msra.mxu0 0.0
        %906 = vmatprep.subr.mxu0 0.0
        %907 = vmatpush2.msra.mxu0 0.0
        %908 = vmatprep.subr.mxu0 0.0
        %909 = vmatpush2.msra.mxu0 0.0
        %910 = vmatprep.subr.mxu0 0.0
        %911 = vmatpush2.msra.mxu0 0.0
        %912 = vmatprep.subr.mxu0 0.0
        %913 = vmatpush2.msra.mxu0 0.0
        %914 = vmatprep.subr.mxu0 0.0
        %915 = vmatpush2.msra.mxu0 0.0
        %916 = vmatprep.subr.mxu0 0.0
        %917 = vmatpush2.msra.mxu0 0.0
        %918 = vmatprep.subr.mxu0 0.0
        %919 = vmatpush2.msra.mxu0 0.0
        %920 = vmatprep.subr.mxu0 0.0
        %921 = vmatpush2.msra.mxu0 0.0
        %922 = vmatprep.subr.mxu0 0.0
        %923 = vmatpush2.msra.mxu0 0.0
        %924 = vmatprep.subr.mxu0 0.0
        %925 = vmatpush2.msra.mxu0 0.0
        %926 = vmatprep.subr.mxu0 0.0
        %927 = vmatpush2.msra.mxu0 0.0
        %928 = vmatprep.subr.mxu0 0.0
        %929 = vmatpush2.msra.mxu0 0.0
        %930 = vmatprep.subr.mxu0 0.0
        %931 = vmatpush2.msra.mxu0 0.0
        %932 = vmatprep.subr.mxu0 0.0
        %933 = vmatpush2.msra.mxu0 0.0
        %934 = vmatprep.subr.mxu0 0.0
        %935 = vmatpush2.msra.mxu0 0.0
        %936 = vmatprep.mubr.f32.mxu0 0.0
        %937 = vmatmul.mubr.f32.gmra.mxu0 %v800
        %v938 = vpop.f32.mrf.mxu0
        %v939 = vadd.f32 0.0, %v938
        %v940 = vpop.f32.mrf.mxu0
        %941 = vdwg.mxu0
        %s942 = scalar_lea.vmem %s265, 24 [#allocation3]
        %v943 = vld [vmem:[%s942] sm:$0xff]
        %v944 = vld [vmem:[%s942 + $0x8] sm:$0xff]
        %v945 = vld [vmem:[%s942 + $0x10] sm:$0xff]
        %v946 = vld [vmem:[%s584] sm:$0xff]
        %947 = vmatprep.subr.mxu0 %v422
        %948 = vmatpush1.msra.mxu0 %v421
        %949 = vmatprep.subr.mxu0 %v419
        %950 = vmatpush1.msra.mxu0 %v418
        %951 = vmatprep.subr.mxu0 %v416
        %952 = vmatpush1.msra.mxu0 %v415
        %953 = vmatprep.subr.mxu0 %v413
        %954 = vmatpush1.msra.mxu0 %v412
        %955 = vmatprep.subr.mxu0 %v410
        %956 = vmatpush1.msra.mxu0 %v409
        %957 = vmatprep.subr.mxu0 %v407
        %958 = vmatpush1.msra.mxu0 %v406
        %959 = vmatprep.subr.mxu0 %v404
        %960 = vmatpush1.msra.mxu0 %v403
        %961 = vmatprep.subr.mxu0 %v401
        %962 = vmatpush1.msra.mxu0 %v400
        %963 = vmatprep.subr.mxu0 %v398
        %964 = vmatpush1.msra.mxu0 %v397
        %965 = vmatprep.subr.mxu0 %v395
        %966 = vmatpush1.msra.mxu0 %v394
        %967 = vmatprep.subr.mxu0 %v392
        %968 = vmatpush1.msra.mxu0 %v391
        %969 = vmatprep.subr.mxu0 %v389
        %970 = vmatpush1.msra.mxu0 %v388
        %971 = vmatprep.subr.mxu0 %v386
        %972 = vmatpush1.msra.mxu0 %v385
        %973 = vmatprep.subr.mxu0 %v383
        %974 = vmatpush1.msra.mxu0 %v382
        %975 = vmatprep.subr.mxu0 %v380
        %976 = vmatpush1.msra.mxu0 %v379
        %977 = vmatprep.subr.mxu0 %v377
        %978 = vmatpush1.msra.mxu0 %v376
        %979 = vmatprep.subr.mxu0 0.0
        %980 = vmatpush2.msra.mxu0 0.0
        %981 = vmatprep.subr.mxu0 0.0
        %982 = vmatpush2.msra.mxu0 0.0
        %983 = vmatprep.subr.mxu0 0.0
        %984 = vmatpush2.msra.mxu0 0.0
        %985 = vmatprep.subr.mxu0 0.0
        %986 = vmatpush2.msra.mxu0 0.0
        %987 = vmatprep.subr.mxu0 0.0
        %988 = vmatpush2.msra.mxu0 0.0
        %989 = vmatprep.subr.mxu0 0.0
        %990 = vmatpush2.msra.mxu0 0.0
        %991 = vmatprep.subr.mxu0 0.0
        %992 = vmatpush2.msra.mxu0 0.0
        %993 = vmatprep.subr.mxu0 0.0
        %994 = vmatpush2.msra.mxu0 0.0
        %995 = vmatprep.subr.mxu0 0.0
        %996 = vmatpush2.msra.mxu0 0.0
        %997 = vmatprep.subr.mxu0 0.0
        %998 = vmatpush2.msra.mxu0 0.0
        %999 = vmatprep.subr.mxu0 0.0
        %1000 = vmatpush2.msra.mxu0 0.0
        %1001 = vmatprep.subr.mxu0 0.0
        %1002 = vmatpush2.msra.mxu0 0.0
        %1003 = vmatprep.subr.mxu0 0.0
        %1004 = vmatpush2.msra.mxu0 0.0
        %1005 = vmatprep.subr.mxu0 0.0
        %1006 = vmatpush2.msra.mxu0 0.0
        %1007 = vmatprep.subr.mxu0 0.0
        %1008 = vmatpush2.msra.mxu0 0.0
        %1009 = vmatprep.subr.mxu0 0.0
        %1010 = vmatpush2.msra.mxu0 0.0
        %1011 = vmatprep.mubr.f32.mxu0 0.0
        %1012 = vmatmul.mubr.f32.gmra.mxu0 %v946
        %v1013 = vpop.f32.mrf.mxu0
        %v1014 = vadd.f32 0.0, %v1013
        %v1015 = vpop.f32.mrf.mxu0
        %v1016 = vadd.f32 0.0, %v1015
        %1017 = vdwg.mxu0
        %1018 = vmatprep.subr.mxu0 0.0
        %1019 = vmatpush1.msra.mxu0 %v423
        %1020 = vmatprep.subr.mxu0 0.0
        %1021 = vmatpush1.msra.mxu0 %v420
        %1022 = vmatprep.subr.mxu0 0.0
        %1023 = vmatpush1.msra.mxu0 %v417
        %1024 = vmatprep.subr.mxu0 0.0
        %1025 = vmatpush1.msra.mxu0 %v414
        %1026 = vmatprep.subr.mxu0 0.0
        %1027 = vmatpush1.msra.mxu0 %v411
        %1028 = vmatprep.subr.mxu0 0.0
        %1029 = vmatpush1.msra.mxu0 %v408
        %1030 = vmatprep.subr.mxu0 0.0
        %1031 = vmatpush1.msra.mxu0 %v405
        %1032 = vmatprep.subr.mxu0 0.0
        %1033 = vmatpush1.msra.mxu0 %v402
        %1034 = vmatprep.subr.mxu0 0.0
        %1035 = vmatpush1.msra.mxu0 %v399
        %1036 = vmatprep.subr.mxu0 0.0
        %1037 = vmatpush1.msra.mxu0 %v396
        %1038 = vmatprep.subr.mxu0 0.0
        %1039 = vmatpush1.msra.mxu0 %v393
        %1040 = vmatprep.subr.mxu0 0.0
        %1041 = vmatpush1.msra.mxu0 %v390
        %1042 = vmatprep.subr.mxu0 0.0
        %1043 = vmatpush1.msra.mxu0 %v387
        %1044 = vmatprep.subr.mxu0 0.0
        %1045 = vmatpush1.msra.mxu0 %v384
        %1046 = vmatprep.subr.mxu0 0.0
        %1047 = vmatpush1.msra.mxu0 %v381
        %1048 = vmatprep.subr.mxu0 0.0
        %1049 = vmatpush1.msra.mxu0 %v378
        %1050 = vmatprep.subr.mxu0 0.0
        %1051 = vmatpush2.msra.mxu0 0.0
        %1052 = vmatprep.subr.mxu0 0.0
        %1053 = vmatpush2.msra.mxu0 0.0
        %1054 = vmatprep.subr.mxu0 0.0
        %1055 = vmatpush2.msra.mxu0 0.0
        %1056 = vmatprep.subr.mxu0 0.0
        %1057 = vmatpush2.msra.mxu0 0.0
        %1058 = vmatprep.subr.mxu0 0.0
        %1059 = vmatpush2.msra.mxu0 0.0
        %1060 = vmatprep.subr.mxu0 0.0
        %1061 = vmatpush2.msra.mxu0 0.0
        %1062 = vmatprep.subr.mxu0 0.0
        %1063 = vmatpush2.msra.mxu0 0.0
        %1064 = vmatprep.subr.mxu0 0.0
        %1065 = vmatpush2.msra.mxu0 0.0
        %1066 = vmatprep.subr.mxu0 0.0
        %1067 = vmatpush2.msra.mxu0 0.0
        %1068 = vmatprep.subr.mxu0 0.0
        %1069 = vmatpush2.msra.mxu0 0.0
        %1070 = vmatprep.subr.mxu0 0.0
        %1071 = vmatpush2.msra.mxu0 0.0
        %1072 = vmatprep.subr.mxu0 0.0
        %1073 = vmatpush2.msra.mxu0 0.0
        %1074 = vmatprep.subr.mxu0 0.0
        %1075 = vmatpush2.msra.mxu0 0.0
        %1076 = vmatprep.subr.mxu0 0.0
        %1077 = vmatpush2.msra.mxu0 0.0
        %1078 = vmatprep.subr.mxu0 0.0
        %1079 = vmatpush2.msra.mxu0 0.0
        %1080 = vmatprep.subr.mxu0 0.0
        %1081 = vmatpush2.msra.mxu0 0.0
        %1082 = vmatprep.mubr.f32.mxu0 0.0
        %1083 = vmatmul.mubr.f32.gmra.mxu0 %v946
        %v1084 = vpop.f32.mrf.mxu0
        %v1085 = vadd.f32 0.0, %v1084
        %v1086 = vpop.f32.mrf.mxu0
        %1087 = vdwg.mxu0
        %s1088 = scalar_lea.vmem %s274, 48 [#allocation6]
        %v1089 = vld [vmem:[%s1088] sm:$0xff]
        %v1090 = vld [vmem:[%s1088 + $0x8] sm:$0xff]
        %v1091 = vld [vmem:[%s1088 + $0x10] sm:$0xff]
        %v1092 = vadd.f32 %v943, %v868
        %v1093 = vxor.u32 %v1092, 2147483648
        %v1094 = vmul.f32 %v1093, 1.442695
        %v1095 = vpow.pop %v1094
        %v1096 = vadd.f32 %v1095, 1.0
        %v1097 = vrcp.pop %v1096
        %v1098 = vmul.f32 1.0, %v1097
        %v1099 = vadd.f32 %v944, %v870
        %v1100 = vxor.u32 %v1099, 2147483648
        %v1101 = vmul.f32 %v1100, 1.442695
        %v1102 = vpow.pop %v1101
        %v1103 = vadd.f32 %v1102, 1.0
        %v1104 = vrcp.pop %v1103
        %v1105 = vmul.f32 1.0, %v1104
        %v1106 = vadd.f32 %v939, %v429
        %v1107 = vmul.f32 %v1098, %v1106
        %v1108 = vadd.f32 %v945, %v1107
        %v1109 = vtanh.pop %v1108
        %v1110 = vsub.f32 1.0, %v1105
        %v1111 = vmul.f32 %v1110, %v1109
        %v1112 = vmul.f32 %v1105, %v800
        %v1113 = vadd.f32 %v1111, %v1112
        %s1114 = sadd.s32 %s753, 1
        %p1115 = scmp.lt.s32.totalorder %s1114, 10
        %s1116 = scalar_select %p1115, 1, 0
        %s1117 = scvt.s32.f32 %s1116
        %v1118 = vstv %s1117
        %v1119 = vmul.f32 %v1118, %v1113
        %s1120 = ssub.f32 1.0, %s1117
        %v1121 = vstv %s1120
        %v1122 = vmul.f32 %v1121, %v800
        %v1123 = vadd.f32 %v1119, %v1122
        %1124 = vst [vmem:[#allocation2] sm:$0xff] %v1123
        %s1125 = scalar_lea.vmem %s307, 8 [#allocation9]
        %1126 = vst [vmem:[%s1125] sm:$0xff] %v1123
        %v1127 = vadd.f32 %v1089, %v1014
        %v1128 = vxor.u32 %v1127, 2147483648
        %v1129 = vmul.f32 %v1128, 1.442695
        %v1130 = vpow.pop %v1129
        %v1131 = vadd.f32 %v1130, 1.0
        %v1132 = vrcp.pop %v1131
        %v1133 = vmul.f32 1.0, %v1132
        %v1134 = vadd.f32 %v1090, %v1016
        %v1135 = vxor.u32 %v1134, 2147483648
        %v1136 = vmul.f32 %v1135, 1.442695
        %v1137 = vpow.pop %v1136
        %v1138 = vadd.f32 %v1137, 1.0
        %v1139 = vrcp.pop %v1138
        %v1140 = vmul.f32 1.0, %v1139
        %v1141 = vadd.f32 %v1085, %v437
        %v1142 = vmul.f32 %v1133, %v1141
        %v1143 = vadd.f32 %v1091, %v1142
        %v1144 = vtanh.pop %v1143
        %v1145 = vsub.f32 1.0, %v1140
        %v1146 = vmul.f32 %v1145, %v1144
        %v1147 = vmul.f32 %v1140, %v946
        %v1148 = vadd.f32 %v1146, %v1147
        %s1149 = ssub.s32 10, %s753
        %p1150 = scmp.lt.s32.totalorder %s1149, 10
        %s1151 = scalar_select %p1150, 1, 0
        %s1152 = scvt.s32.f32 %s1151
        %v1153 = vstv %s1152
        %v1154 = vmul.f32 %v1153, %v1148
        %s1155 = ssub.f32 1.0, %s1152
        %v1156 = vstv %s1155
        %v1157 = vmul.f32 %v1156, %v946
        %v1158 = vadd.f32 %v1154, %v1157
        %1159 = vst [vmem:[%s584] sm:$0xff] %v1158
        %s1160 = scalar_lea.vmem %s314, 16 [#allocation10]
        %1161 = vst [vmem:[%s1160] sm:$0xff] %v1158
        %v1162 = vld [vmem:[#allocation2] sm:$0xff]
        %1163 = vmatprep.subr.mxu0 %v373
        %1164 = vmatpush1.msra.mxu0 %v372
        %1165 = vmatprep.subr.mxu0 %v370
        %1166 = vmatpush1.msra.mxu0 %v369
        %1167 = vmatprep.subr.mxu0 %v367
        %1168 = vmatpush1.msra.mxu0 %v366
        %1169 = vmatprep.subr.mxu0 %v364
        %1170 = vmatpush1.msra.mxu0 %v363
        %1171 = vmatprep.subr.mxu0 %v361
        %1172 = vmatpush1.msra.mxu0 %v360
        %1173 = vmatprep.subr.mxu0 %v358
        %1174 = vmatpush1.msra.mxu0 %v357
        %1175 = vmatprep.subr.mxu0 %v355
        %1176 = vmatpush1.msra.mxu0 %v354
        %1177 = vmatprep.subr.mxu0 %v352
        %1178 = vmatpush1.msra.mxu0 %v351
        %1179 = vmatprep.subr.mxu0 %v349
        %1180 = vmatpush1.msra.mxu0 %v348
        %1181 = vmatprep.subr.mxu0 %v346
        %1182 = vmatpush1.msra.mxu0 %v345
        %1183 = vmatprep.subr.mxu0 %v343
        %1184 = vmatpush1.msra.mxu0 %v342
        %1185 = vmatprep.subr.mxu0 %v340
        %1186 = vmatpush1.msra.mxu0 %v339
        %1187 = vmatprep.subr.mxu0 %v337
        %1188 = vmatpush1.msra.mxu0 %v336
        %1189 = vmatprep.subr.mxu0 %v334
        %1190 = vmatpush1.msra.mxu0 %v333
        %1191 = vmatprep.subr.mxu0 %v331
        %1192 = vmatpush1.msra.mxu0 %v330
        %1193 = vmatprep.subr.mxu0 %v328
        %1194 = vmatpush1.msra.mxu0 %v327
        %1195 = vmatprep.subr.mxu0 0.0
        %1196 = vmatpush2.msra.mxu0 0.0
        %1197 = vmatprep.subr.mxu0 0.0
        %1198 = vmatpush2.msra.mxu0 0.0
        %1199 = vmatprep.subr.mxu0 0.0
        %1200 = vmatpush2.msra.mxu0 0.0
        %1201 = vmatprep.subr.mxu0 0.0
        %1202 = vmatpush2.msra.mxu0 0.0
        %1203 = vmatprep.subr.mxu0 0.0
        %1204 = vmatpush2.msra.mxu0 0.0
        %1205 = vmatprep.subr.mxu0 0.0
        %1206 = vmatpush2.msra.mxu0 0.0
        %1207 = vmatprep.subr.mxu0 0.0
        %1208 = vmatpush2.msra.mxu0 0.0
        %1209 = vmatprep.subr.mxu0 0.0
        %1210 = vmatpush2.msra.mxu0 0.0
        %1211 = vmatprep.subr.mxu0 0.0
        %1212 = vmatpush2.msra.mxu0 0.0
        %1213 = vmatprep.subr.mxu0 0.0
        %1214 = vmatpush2.msra.mxu0 0.0
        %1215 = vmatprep.subr.mxu0 0.0
        %1216 = vmatpush2.msra.mxu0 0.0
        %1217 = vmatprep.subr.mxu0 0.0
        %1218 = vmatpush2.msra.mxu0 0.0
        %1219 = vmatprep.subr.mxu0 0.0
        %1220 = vmatpush2.msra.mxu0 0.0
        %1221 = vmatprep.subr.mxu0 0.0
        %1222 = vmatpush2.msra.mxu0 0.0
        %1223 = vmatprep.subr.mxu0 0.0
        %1224 = vmatpush2.msra.mxu0 0.0
        %1225 = vmatprep.subr.mxu0 0.0
        %1226 = vmatpush2.msra.mxu0 0.0
        %1227 = vmatprep.mubr.f32.mxu0 0.0
        %1228 = vmatmul.mubr.f32.gmra.mxu0 %v1162
        %v1229 = vpop.f32.mrf.mxu0
        %v1230 = vadd.f32 0.0, %v1229
        %v1231 = vpop.f32.mrf.mxu0
        %v1232 = vadd.f32 0.0, %v1231
        %1233 = vdwg.mxu0
        %1234 = vmatprep.subr.mxu0 0.0
        %1235 = vmatpush1.msra.mxu0 %v374
        %1236 = vmatprep.subr.mxu0 0.0
        %1237 = vmatpush1.msra.mxu0 %v371
        %1238 = vmatprep.subr.mxu0 0.0
        %1239 = vmatpush1.msra.mxu0 %v368
        %1240 = vmatprep.subr.mxu0 0.0
        %1241 = vmatpush1.msra.mxu0 %v365
        %1242 = vmatprep.subr.mxu0 0.0
        %1243 = vmatpush1.msra.mxu0 %v362
        %1244 = vmatprep.subr.mxu0 0.0
        %1245 = vmatpush1.msra.mxu0 %v359
        %1246 = vmatprep.subr.mxu0 0.0
        %1247 = vmatpush1.msra.mxu0 %v356
        %1248 = vmatprep.subr.mxu0 0.0
        %1249 = vmatpush1.msra.mxu0 %v353
        %1250 = vmatprep.subr.mxu0 0.0
        %1251 = vmatpush1.msra.mxu0 %v350
        %1252 = vmatprep.subr.mxu0 0.0
        %1253 = vmatpush1.msra.mxu0 %v347
        %1254 = vmatprep.subr.mxu0 0.0
        %1255 = vmatpush1.msra.mxu0 %v344
        %1256 = vmatprep.subr.mxu0 0.0
        %1257 = vmatpush1.msra.mxu0 %v341
        %1258 = vmatprep.subr.mxu0 0.0
        %1259 = vmatpush1.msra.mxu0 %v338
        %1260 = vmatprep.subr.mxu0 0.0
        %1261 = vmatpush1.msra.mxu0 %v335
        %1262 = vmatprep.subr.mxu0 0.0
        %1263 = vmatpush1.msra.mxu0 %v332
        %1264 = vmatprep.subr.mxu0 0.0
        %1265 = vmatpush1.msra.mxu0 %v329
        %1266 = vmatprep.subr.mxu0 0.0
        %1267 = vmatpush2.msra.mxu0 0.0
        %1268 = vmatprep.subr.mxu0 0.0
        %1269 = vmatpush2.msra.mxu0 0.0
        %1270 = vmatprep.subr.mxu0 0.0
        %1271 = vmatpush2.msra.mxu0 0.0
        %1272 = vmatprep.subr.mxu0 0.0
        %1273 = vmatpush2.msra.mxu0 0.0
        %1274 = vmatprep.subr.mxu0 0.0
        %1275 = vmatpush2.msra.mxu0 0.0
        %1276 = vmatprep.subr.mxu0 0.0
        %1277 = vmatpush2.msra.mxu0 0.0
        %1278 = vmatprep.subr.mxu0 0.0
        %1279 = vmatpush2.msra.mxu0 0.0
        %1280 = vmatprep.subr.mxu0 0.0
        %1281 = vmatpush2.msra.mxu0 0.0
        %1282 = vmatprep.subr.mxu0 0.0
        %1283 = vmatpush2.msra.mxu0 0.0
        %1284 = vmatprep.subr.mxu0 0.0
        %1285 = vmatpush2.msra.mxu0 0.0
        %1286 = vmatprep.subr.mxu0 0.0
        %1287 = vmatpush2.msra.mxu0 0.0
        %1288 = vmatprep.subr.mxu0 0.0
        %1289 = vmatpush2.msra.mxu0 0.0
        %1290 = vmatprep.subr.mxu0 0.0
        %1291 = vmatpush2.msra.mxu0 0.0
        %1292 = vmatprep.subr.mxu0 0.0
        %1293 = vmatpush2.msra.mxu0 0.0
        %1294 = vmatprep.subr.mxu0 0.0
        %1295 = vmatpush2.msra.mxu0 0.0
        %1296 = vmatprep.subr.mxu0 0.0
        %1297 = vmatpush2.msra.mxu0 0.0
        %1298 = vmatprep.mubr.f32.mxu0 0.0
        %1299 = vmatmul.mubr.f32.gmra.mxu0 %v1162
        %v1300 = vpop.f32.mrf.mxu0
        %v1301 = vadd.f32 0.0, %v1300
        %v1302 = vpop.f32.mrf.mxu0
        %1303 = vdwg.mxu0
        %s1304 = scalar_lea.vmem %s265, 48 [#allocation3]
        %v1305 = vld [vmem:[%s1304] sm:$0xff]
        %v1306 = vld [vmem:[%s1304 + $0x8] sm:$0xff]
        %v1307 = vld [vmem:[%s1304 + $0x10] sm:$0xff]
        %v1308 = vld [vmem:[%s584] sm:$0xff]
        %1309 = vmatprep.subr.mxu0 %v422
        %1310 = vmatpush1.msra.mxu0 %v421
        %1311 = vmatprep.subr.mxu0 %v419
        %1312 = vmatpush1.msra.mxu0 %v418
        %1313 = vmatprep.subr.mxu0 %v416
        %1314 = vmatpush1.msra.mxu0 %v415
        %1315 = vmatprep.subr.mxu0 %v413
        %1316 = vmatpush1.msra.mxu0 %v412
        %1317 = vmatprep.subr.mxu0 %v410
        %1318 = vmatpush1.msra.mxu0 %v409
        %1319 = vmatprep.subr.mxu0 %v407
        %1320 = vmatpush1.msra.mxu0 %v406
        %1321 = vmatprep.subr.mxu0 %v404
        %1322 = vmatpush1.msra.mxu0 %v403
        %1323 = vmatprep.subr.mxu0 %v401
        %1324 = vmatpush1.msra.mxu0 %v400
        %1325 = vmatprep.subr.mxu0 %v398
        %1326 = vmatpush1.msra.mxu0 %v397
        %1327 = vmatprep.subr.mxu0 %v395
        %1328 = vmatpush1.msra.mxu0 %v394
        %1329 = vmatprep.subr.mxu0 %v392
        %1330 = vmatpush1.msra.mxu0 %v391
        %1331 = vmatprep.subr.mxu0 %v389
        %1332 = vmatpush1.msra.mxu0 %v388
        %1333 = vmatprep.subr.mxu0 %v386
        %1334 = vmatpush1.msra.mxu0 %v385
        %1335 = vmatprep.subr.mxu0 %v383
        %1336 = vmatpush1.msra.mxu0 %v382
        %1337 = vmatprep.subr.mxu0 %v380
        %1338 = vmatpush1.msra.mxu0 %v379
        %1339 = vmatprep.subr.mxu0 %v377
        %1340 = vmatpush1.msra.mxu0 %v376
        %1341 = vmatprep.subr.mxu0 0.0
        %1342 = vmatpush2.msra.mxu0 0.0
        %1343 = vmatprep.subr.mxu0 0.0
        %1344 = vmatpush2.msra.mxu0 0.0
        %1345 = vmatprep.subr.mxu0 0.0
        %1346 = vmatpush2.msra.mxu0 0.0
        %1347 = vmatprep.subr.mxu0 0.0
        %1348 = vmatpush2.msra.mxu0 0.0
        %1349 = vmatprep.subr.mxu0 0.0
        %1350 = vmatpush2.msra.mxu0 0.0
        %1351 = vmatprep.subr.mxu0 0.0
        %1352 = vmatpush2.msra.mxu0 0.0
        %1353 = vmatprep.subr.mxu0 0.0
        %1354 = vmatpush2.msra.mxu0 0.0
        %1355 = vmatprep.subr.mxu0 0.0
        %1356 = vmatpush2.msra.mxu0 0.0
        %1357 = vmatprep.subr.mxu0 0.0
        %1358 = vmatpush2.msra.mxu0 0.0
        %1359 = vmatprep.subr.mxu0 0.0
        %1360 = vmatpush2.msra.mxu0 0.0
        %1361 = vmatprep.subr.mxu0 0.0
        %1362 = vmatpush2.msra.mxu0 0.0
        %1363 = vmatprep.subr.mxu0 0.0
        %1364 = vmatpush2.msra.mxu0 0.0
        %1365 = vmatprep.subr.mxu0 0.0
        %1366 = vmatpush2.msra.mxu0 0.0
        %1367 = vmatprep.subr.mxu0 0.0
        %1368 = vmatpush2.msra.mxu0 0.0
        %1369 = vmatprep.subr.mxu0 0.0
        %1370 = vmatpush2.msra.mxu0 0.0
        %1371 = vmatprep.subr.mxu0 0.0
        %1372 = vmatpush2.msra.mxu0 0.0
        %1373 = vmatprep.mubr.f32.mxu0 0.0
        %1374 = vmatmul.mubr.f32.gmra.mxu0 %v1308
        %v1375 = vpop.f32.mrf.mxu0
        %v1376 = vadd.f32 0.0, %v1375
        %v1377 = vpop.f32.mrf.mxu0
        %v1378 = vadd.f32 0.0, %v1377
        %1379 = vdwg.mxu0
        %1380 = vmatprep.subr.mxu0 0.0
        %1381 = vmatpush1.msra.mxu0 %v423
        %1382 = vmatprep.subr.mxu0 0.0
        %1383 = vmatpush1.msra.mxu0 %v420
        %1384 = vmatprep.subr.mxu0 0.0
        %1385 = vmatpush1.msra.mxu0 %v417
        %1386 = vmatprep.subr.mxu0 0.0
        %1387 = vmatpush1.msra.mxu0 %v414
        %1388 = vmatprep.subr.mxu0 0.0
        %1389 = vmatpush1.msra.mxu0 %v411
        %1390 = vmatprep.subr.mxu0 0.0
        %1391 = vmatpush1.msra.mxu0 %v408
        %1392 = vmatprep.subr.mxu0 0.0
        %1393 = vmatpush1.msra.mxu0 %v405
        %1394 = vmatprep.subr.mxu0 0.0
        %1395 = vmatpush1.msra.mxu0 %v402
        %1396 = vmatprep.subr.mxu0 0.0
        %1397 = vmatpush1.msra.mxu0 %v399
        %1398 = vmatprep.subr.mxu0 0.0
        %1399 = vmatpush1.msra.mxu0 %v396
        %1400 = vmatprep.subr.mxu0 0.0
        %1401 = vmatpush1.msra.mxu0 %v393
        %1402 = vmatprep.subr.mxu0 0.0
        %1403 = vmatpush1.msra.mxu0 %v390
        %1404 = vmatprep.subr.mxu0 0.0
        %1405 = vmatpush1.msra.mxu0 %v387
        %1406 = vmatprep.subr.mxu0 0.0
        %1407 = vmatpush1.msra.mxu0 %v384
        %1408 = vmatprep.subr.mxu0 0.0
        %1409 = vmatpush1.msra.mxu0 %v381
        %1410 = vmatprep.subr.mxu0 0.0
        %1411 = vmatpush1.msra.mxu0 %v378
        %1412 = vmatprep.subr.mxu0 0.0
        %1413 = vmatpush2.msra.mxu0 0.0
        %1414 = vmatprep.subr.mxu0 0.0
        %1415 = vmatpush2.msra.mxu0 0.0
        %1416 = vmatprep.subr.mxu0 0.0
        %1417 = vmatpush2.msra.mxu0 0.0
        %1418 = vmatprep.subr.mxu0 0.0
        %1419 = vmatpush2.msra.mxu0 0.0
        %1420 = vmatprep.subr.mxu0 0.0
        %1421 = vmatpush2.msra.mxu0 0.0
        %1422 = vmatprep.subr.mxu0 0.0
        %1423 = vmatpush2.msra.mxu0 0.0
        %1424 = vmatprep.subr.mxu0 0.0
        %1425 = vmatpush2.msra.mxu0 0.0
        %1426 = vmatprep.subr.mxu0 0.0
        %1427 = vmatpush2.msra.mxu0 0.0
        %1428 = vmatprep.subr.mxu0 0.0
        %1429 = vmatpush2.msra.mxu0 0.0
        %1430 = vmatprep.subr.mxu0 0.0
        %1431 = vmatpush2.msra.mxu0 0.0
        %1432 = vmatprep.subr.mxu0 0.0
        %1433 = vmatpush2.msra.mxu0 0.0
        %1434 = vmatprep.subr.mxu0 0.0
        %1435 = vmatpush2.msra.mxu0 0.0
        %1436 = vmatprep.subr.mxu0 0.0
        %1437 = vmatpush2.msra.mxu0 0.0
        %1438 = vmatprep.subr.mxu0 0.0
        %1439 = vmatpush2.msra.mxu0 0.0
        %1440 = vmatprep.subr.mxu0 0.0
        %1441 = vmatpush2.msra.mxu0 0.0
        %1442 = vmatprep.subr.mxu0 0.0
        %1443 = vmatpush2.msra.mxu0 0.0
        %1444 = vmatprep.mubr.f32.mxu0 0.0
        %1445 = vmatmul.mubr.f32.gmra.mxu0 %v1308
        %v1446 = vpop.f32.mrf.mxu0
        %v1447 = vadd.f32 0.0, %v1446
        %v1448 = vpop.f32.mrf.mxu0
        %1449 = vdwg.mxu0
        %s1450 = scalar_lea.vmem %s274, 24 [#allocation6]
        %v1451 = vld [vmem:[%s1450] sm:$0xff]
        %v1452 = vld [vmem:[%s1450 + $0x8] sm:$0xff]
        %v1453 = vld [vmem:[%s1450 + $0x10] sm:$0xff]
        %v1454 = vadd.f32 %v1305, %v1230
        %v1455 = vxor.u32 %v1454, 2147483648
        %v1456 = vmul.f32 %v1455, 1.442695
        %v1457 = vpow.pop %v1456
        %v1458 = vadd.f32 %v1457, 1.0
        %v1459 = vrcp.pop %v1458
        %v1460 = vmul.f32 1.0, %v1459
        %v1461 = vadd.f32 %v1306, %v1232
        %v1462 = vxor.u32 %v1461, 2147483648
        %v1463 = vmul.f32 %v1462, 1.442695
        %v1464 = vpow.pop %v1463
        %v1465 = vadd.f32 %v1464, 1.0
        %v1466 = vrcp.pop %v1465
        %v1467 = vmul.f32 1.0, %v1466
        %v1468 = vadd.f32 %v1301, %v429
        %v1469 = vmul.f32 %v1460, %v1468
        %v1470 = vadd.f32 %v1307, %v1469
        %v1471 = vtanh.pop %v1470
        %v1472 = vsub.f32 1.0, %v1467
        %v1473 = vmul.f32 %v1472, %v1471
        %v1474 = vmul.f32 %v1467, %v1162
        %v1475 = vadd.f32 %v1473, %v1474
        %s1476 = sadd.s32 %s753, 2
        %p1477 = scmp.lt.s32.totalorder %s1476, 10
        %s1478 = scalar_select %p1477, 1, 0
        %s1479 = scvt.s32.f32 %s1478
        %v1480 = vstv %s1479
        %v1481 = vmul.f32 %v1480, %v1475
        %s1482 = ssub.f32 1.0, %s1479
        %v1483 = vstv %s1482
        %v1484 = vmul.f32 %v1483, %v1162
        %v1485 = vadd.f32 %v1481, %v1484
        %1486 = vst [vmem:[#allocation2] sm:$0xff] %v1485
        %s1487 = scalar_lea.vmem %s307, 16 [#allocation9]
        %1488 = vst [vmem:[%s1487] sm:$0xff] %v1485
        %v1489 = vadd.f32 %v1451, %v1376
        %v1490 = vxor.u32 %v1489, 2147483648
        %v1491 = vmul.f32 %v1490, 1.442695
        %v1492 = vpow.pop %v1491
        %v1493 = vadd.f32 %v1492, 1.0
        %v1494 = vrcp.pop %v1493
        %v1495 = vmul.f32 1.0, %v1494
        %v1496 = vadd.f32 %v1452, %v1378
        %v1497 = vxor.u32 %v1496, 2147483648
        %v1498 = vmul.f32 %v1497, 1.442695
        %v1499 = vpow.pop %v1498
        %v1500 = vadd.f32 %v1499, 1.0
        %v1501 = vrcp.pop %v1500
        %v1502 = vmul.f32 1.0, %v1501
        %v1503 = vadd.f32 %v1447, %v437
        %v1504 = vmul.f32 %v1495, %v1503
        %v1505 = vadd.f32 %v1453, %v1504
        %v1506 = vtanh.pop %v1505
        %v1507 = vsub.f32 1.0, %v1502
        %v1508 = vmul.f32 %v1507, %v1506
        %v1509 = vmul.f32 %v1502, %v1308
        %v1510 = vadd.f32 %v1508, %v1509
        %s1511 = ssub.s32 9, %s753
        %p1512 = scmp.lt.s32.totalorder %s1511, 10
        %s1513 = scalar_select %p1512, 1, 0
        %s1514 = scvt.s32.f32 %s1513
        %v1515 = vstv %s1514
        %v1516 = vmul.f32 %v1515, %v1510
        %s1517 = ssub.f32 1.0, %s1514
        %v1518 = vstv %s1517
        %v1519 = vmul.f32 %v1518, %v1308
        %v1520 = vadd.f32 %v1516, %v1519
        %1521 = vst [vmem:[%s584] sm:$0xff] %v1520
        %s1522 = scalar_lea.vmem %s314, 8 [#allocation10]
        %1523 = vst [vmem:[%s1522] sm:$0xff] %v1520
        %v1524 = vld [vmem:[#allocation2] sm:$0xff]
        %1525 = vmatprep.subr.mxu0 %v373
        %1526 = vmatpush1.msra.mxu0 %v372
        %1527 = vmatprep.subr.mxu0 %v370
        %1528 = vmatpush1.msra.mxu0 %v369
        %1529 = vmatprep.subr.mxu0 %v367
        %1530 = vmatpush1.msra.mxu0 %v366
        %1531 = vmatprep.subr.mxu0 %v364
        %1532 = vmatpush1.msra.mxu0 %v363
        %1533 = vmatprep.subr.mxu0 %v361
        %1534 = vmatpush1.msra.mxu0 %v360
        %1535 = vmatprep.subr.mxu0 %v358
        %1536 = vmatpush1.msra.mxu0 %v357
        %1537 = vmatprep.subr.mxu0 %v355
        %1538 = vmatpush1.msra.mxu0 %v354
        %1539 = vmatprep.subr.mxu0 %v352
        %1540 = vmatpush1.msra.mxu0 %v351
        %1541 = vmatprep.subr.mxu0 %v349
        %1542 = vmatpush1.msra.mxu0 %v348
        %1543 = vmatprep.subr.mxu0 %v346
        %1544 = vmatpush1.msra.mxu0 %v345
        %1545 = vmatprep.subr.mxu0 %v343
        %1546 = vmatpush1.msra.mxu0 %v342
        %1547 = vmatprep.subr.mxu0 %v340
        %1548 = vmatpush1.msra.mxu0 %v339
        %1549 = vmatprep.subr.mxu0 %v337
        %1550 = vmatpush1.msra.mxu0 %v336
        %1551 = vmatprep.subr.mxu0 %v334
        %1552 = vmatpush1.msra.mxu0 %v333
        %1553 = vmatprep.subr.mxu0 %v331
        %1554 = vmatpush1.msra.mxu0 %v330
        %1555 = vmatprep.subr.mxu0 %v328
        %1556 = vmatpush1.msra.mxu0 %v327
        %1557 = vmatprep.subr.mxu0 0.0
        %1558 = vmatpush2.msra.mxu0 0.0
        %1559 = vmatprep.subr.mxu0 0.0
        %1560 = vmatpush2.msra.mxu0 0.0
        %1561 = vmatprep.subr.mxu0 0.0
        %1562 = vmatpush2.msra.mxu0 0.0
        %1563 = vmatprep.subr.mxu0 0.0
        %1564 = vmatpush2.msra.mxu0 0.0
        %1565 = vmatprep.subr.mxu0 0.0
        %1566 = vmatpush2.msra.mxu0 0.0
        %1567 = vmatprep.subr.mxu0 0.0
        %1568 = vmatpush2.msra.mxu0 0.0
        %1569 = vmatprep.subr.mxu0 0.0
        %1570 = vmatpush2.msra.mxu0 0.0
        %1571 = vmatprep.subr.mxu0 0.0
        %1572 = vmatpush2.msra.mxu0 0.0
        %1573 = vmatprep.subr.mxu0 0.0
        %1574 = vmatpush2.msra.mxu0 0.0
        %1575 = vmatprep.subr.mxu0 0.0
        %1576 = vmatpush2.msra.mxu0 0.0
        %1577 = vmatprep.subr.mxu0 0.0
        %1578 = vmatpush2.msra.mxu0 0.0
        %1579 = vmatprep.subr.mxu0 0.0
        %1580 = vmatpush2.msra.mxu0 0.0
        %1581 = vmatprep.subr.mxu0 0.0
        %1582 = vmatpush2.msra.mxu0 0.0
        %1583 = vmatprep.subr.mxu0 0.0
        %1584 = vmatpush2.msra.mxu0 0.0
        %1585 = vmatprep.subr.mxu0 0.0
        %1586 = vmatpush2.msra.mxu0 0.0
        %1587 = vmatprep.subr.mxu0 0.0
        %1588 = vmatpush2.msra.mxu0 0.0
        %1589 = vmatprep.mubr.f32.mxu0 0.0
        %1590 = vmatmul.mubr.f32.gmra.mxu0 %v1524
        %v1591 = vpop.f32.mrf.mxu0
        %v1592 = vadd.f32 0.0, %v1591
        %v1593 = vpop.f32.mrf.mxu0
        %v1594 = vadd.f32 0.0, %v1593
        %1595 = vdwg.mxu0
        %1596 = vmatprep.subr.mxu0 0.0
        %1597 = vmatpush1.msra.mxu0 %v374
        %1598 = vmatprep.subr.mxu0 0.0
        %1599 = vmatpush1.msra.mxu0 %v371
        %1600 = vmatprep.subr.mxu0 0.0
        %1601 = vmatpush1.msra.mxu0 %v368
        %1602 = vmatprep.subr.mxu0 0.0
        %1603 = vmatpush1.msra.mxu0 %v365
        %1604 = vmatprep.subr.mxu0 0.0
        %1605 = vmatpush1.msra.mxu0 %v362
        %1606 = vmatprep.subr.mxu0 0.0
        %1607 = vmatpush1.msra.mxu0 %v359
        %1608 = vmatprep.subr.mxu0 0.0
        %1609 = vmatpush1.msra.mxu0 %v356
        %1610 = vmatprep.subr.mxu0 0.0
        %1611 = vmatpush1.msra.mxu0 %v353
        %1612 = vmatprep.subr.mxu0 0.0
        %1613 = vmatpush1.msra.mxu0 %v350
        %1614 = vmatprep.subr.mxu0 0.0
        %1615 = vmatpush1.msra.mxu0 %v347
        %1616 = vmatprep.subr.mxu0 0.0
        %1617 = vmatpush1.msra.mxu0 %v344
        %1618 = vmatprep.subr.mxu0 0.0
        %1619 = vmatpush1.msra.mxu0 %v341
        %1620 = vmatprep.subr.mxu0 0.0
        %1621 = vmatpush1.msra.mxu0 %v338
        %1622 = vmatprep.subr.mxu0 0.0
        %1623 = vmatpush1.msra.mxu0 %v335
        %1624 = vmatprep.subr.mxu0 0.0
        %1625 = vmatpush1.msra.mxu0 %v332
        %1626 = vmatprep.subr.mxu0 0.0
        %1627 = vmatpush1.msra.mxu0 %v329
        %1628 = vmatprep.subr.mxu0 0.0
        %1629 = vmatpush2.msra.mxu0 0.0
        %1630 = vmatprep.subr.mxu0 0.0
        %1631 = vmatpush2.msra.mxu0 0.0
        %1632 = vmatprep.subr.mxu0 0.0
        %1633 = vmatpush2.msra.mxu0 0.0
        %1634 = vmatprep.subr.mxu0 0.0
        %1635 = vmatpush2.msra.mxu0 0.0
        %1636 = vmatprep.subr.mxu0 0.0
        %1637 = vmatpush2.msra.mxu0 0.0
        %1638 = vmatprep.subr.mxu0 0.0
        %1639 = vmatpush2.msra.mxu0 0.0
        %1640 = vmatprep.subr.mxu0 0.0
        %1641 = vmatpush2.msra.mxu0 0.0
        %1642 = vmatprep.subr.mxu0 0.0
        %1643 = vmatpush2.msra.mxu0 0.0
        %1644 = vmatprep.subr.mxu0 0.0
        %1645 = vmatpush2.msra.mxu0 0.0
        %1646 = vmatprep.subr.mxu0 0.0
        %1647 = vmatpush2.msra.mxu0 0.0
        %1648 = vmatprep.subr.mxu0 0.0
        %1649 = vmatpush2.msra.mxu0 0.0
        %1650 = vmatprep.subr.mxu0 0.0
        %1651 = vmatpush2.msra.mxu0 0.0
        %1652 = vmatprep.subr.mxu0 0.0
        %1653 = vmatpush2.msra.mxu0 0.0
        %1654 = vmatprep.subr.mxu0 0.0
        %1655 = vmatpush2.msra.mxu0 0.0
        %1656 = vmatprep.subr.mxu0 0.0
        %1657 = vmatpush2.msra.mxu0 0.0
        %1658 = vmatprep.subr.mxu0 0.0
        %1659 = vmatpush2.msra.mxu0 0.0
        %1660 = vmatprep.mubr.f32.mxu0 0.0
        %1661 = vmatmul.mubr.f32.gmra.mxu0 %v1524
        %v1662 = vpop.f32.mrf.mxu0
        %v1663 = vadd.f32 0.0, %v1662
        %v1664 = vpop.f32.mrf.mxu0
        %1665 = vdwg.mxu0
        %s1666 = scalar_lea.vmem %s265, 72 [#allocation3]
        %v1667 = vld [vmem:[%s1666] sm:$0xff]
        %v1668 = vld [vmem:[%s1666 + $0x8] sm:$0xff]
        %v1669 = vld [vmem:[%s1666 + $0x10] sm:$0xff]
        %v1670 = vld [vmem:[%s584] sm:$0xff]
        %1671 = vmatprep.subr.mxu0 %v422
        %1672 = vmatpush1.msra.mxu0 %v421
        %1673 = vmatprep.subr.mxu0 %v419
        %1674 = vmatpush1.msra.mxu0 %v418
        %1675 = vmatprep.subr.mxu0 %v416
        %1676 = vmatpush1.msra.mxu0 %v415
        %1677 = vmatprep.subr.mxu0 %v413
        %1678 = vmatpush1.msra.mxu0 %v412
        %1679 = vmatprep.subr.mxu0 %v410
        %1680 = vmatpush1.msra.mxu0 %v409
        %1681 = vmatprep.subr.mxu0 %v407
        %1682 = vmatpush1.msra.mxu0 %v406
        %1683 = vmatprep.subr.mxu0 %v404
        %1684 = vmatpush1.msra.mxu0 %v403
        %1685 = vmatprep.subr.mxu0 %v401
        %1686 = vmatpush1.msra.mxu0 %v400
        %1687 = vmatprep.subr.mxu0 %v398
        %1688 = vmatpush1.msra.mxu0 %v397
        %1689 = vmatprep.subr.mxu0 %v395
        %1690 = vmatpush1.msra.mxu0 %v394
        %1691 = vmatprep.subr.mxu0 %v392
        %1692 = vmatpush1.msra.mxu0 %v391
        %1693 = vmatprep.subr.mxu0 %v389
        %1694 = vmatpush1.msra.mxu0 %v388
        %1695 = vmatprep.subr.mxu0 %v386
        %1696 = vmatpush1.msra.mxu0 %v385
        %1697 = vmatprep.subr.mxu0 %v383
        %1698 = vmatpush1.msra.mxu0 %v382
        %1699 = vmatprep.subr.mxu0 %v380
        %1700 = vmatpush1.msra.mxu0 %v379
        %1701 = vmatprep.subr.mxu0 %v377
        %1702 = vmatpush1.msra.mxu0 %v376
        %1703 = vmatprep.subr.mxu0 0.0
        %1704 = vmatpush2.msra.mxu0 0.0
        %1705 = vmatprep.subr.mxu0 0.0
        %1706 = vmatpush2.msra.mxu0 0.0
        %1707 = vmatprep.subr.mxu0 0.0
        %1708 = vmatpush2.msra.mxu0 0.0
        %1709 = vmatprep.subr.mxu0 0.0
        %1710 = vmatpush2.msra.mxu0 0.0
        %1711 = vmatprep.subr.mxu0 0.0
        %1712 = vmatpush2.msra.mxu0 0.0
        %1713 = vmatprep.subr.mxu0 0.0
        %1714 = vmatpush2.msra.mxu0 0.0
        %1715 = vmatprep.subr.mxu0 0.0
        %1716 = vmatpush2.msra.mxu0 0.0
        %1717 = vmatprep.subr.mxu0 0.0
        %1718 = vmatpush2.msra.mxu0 0.0
        %1719 = vmatprep.subr.mxu0 0.0
        %1720 = vmatpush2.msra.mxu0 0.0
        %1721 = vmatprep.subr.mxu0 0.0
        %1722 = vmatpush2.msra.mxu0 0.0
        %1723 = vmatprep.subr.mxu0 0.0
        %1724 = vmatpush2.msra.mxu0 0.0
        %1725 = vmatprep.subr.mxu0 0.0
        %1726 = vmatpush2.msra.mxu0 0.0
        %1727 = vmatprep.subr.mxu0 0.0
        %1728 = vmatpush2.msra.mxu0 0.0
        %1729 = vmatprep.subr.mxu0 0.0
        %1730 = vmatpush2.msra.mxu0 0.0
        %1731 = vmatprep.subr.mxu0 0.0
        %1732 = vmatpush2.msra.mxu0 0.0
        %1733 = vmatprep.subr.mxu0 0.0
        %1734 = vmatpush2.msra.mxu0 0.0
        %1735 = vmatprep.mubr.f32.mxu0 0.0
        %1736 = vmatmul.mubr.f32.gmra.mxu0 %v1670
        %v1737 = vpop.f32.mrf.mxu0
        %v1738 = vadd.f32 0.0, %v1737
        %v1739 = vpop.f32.mrf.mxu0
        %v1740 = vadd.f32 0.0, %v1739
        %1741 = vdwg.mxu0
        %1742 = vmatprep.subr.mxu0 0.0
        %1743 = vmatpush1.msra.mxu0 %v423
        %1744 = vmatprep.subr.mxu0 0.0
        %1745 = vmatpush1.msra.mxu0 %v420
        %1746 = vmatprep.subr.mxu0 0.0
        %1747 = vmatpush1.msra.mxu0 %v417
        %1748 = vmatprep.subr.mxu0 0.0
        %1749 = vmatpush1.msra.mxu0 %v414
        %1750 = vmatprep.subr.mxu0 0.0
        %1751 = vmatpush1.msra.mxu0 %v411
        %1752 = vmatprep.subr.mxu0 0.0
        %1753 = vmatpush1.msra.mxu0 %v408
        %1754 = vmatprep.subr.mxu0 0.0
        %1755 = vmatpush1.msra.mxu0 %v405
        %1756 = vmatprep.subr.mxu0 0.0
        %1757 = vmatpush1.msra.mxu0 %v402
        %1758 = vmatprep.subr.mxu0 0.0
        %1759 = vmatpush1.msra.mxu0 %v399
        %1760 = vmatprep.subr.mxu0 0.0
        %1761 = vmatpush1.msra.mxu0 %v396
        %1762 = vmatprep.subr.mxu0 0.0
        %1763 = vmatpush1.msra.mxu0 %v393
        %1764 = vmatprep.subr.mxu0 0.0
        %1765 = vmatpush1.msra.mxu0 %v390
        %1766 = vmatprep.subr.mxu0 0.0
        %1767 = vmatpush1.msra.mxu0 %v387
        %1768 = vmatprep.subr.mxu0 0.0
        %1769 = vmatpush1.msra.mxu0 %v384
        %1770 = vmatprep.subr.mxu0 0.0
        %1771 = vmatpush1.msra.mxu0 %v381
        %1772 = vmatprep.subr.mxu0 0.0
        %1773 = vmatpush1.msra.mxu0 %v378
        %1774 = vmatprep.subr.mxu0 0.0
        %1775 = vmatpush2.msra.mxu0 0.0
        %1776 = vmatprep.subr.mxu0 0.0
        %1777 = vmatpush2.msra.mxu0 0.0
        %1778 = vmatprep.subr.mxu0 0.0
        %1779 = vmatpush2.msra.mxu0 0.0
        %1780 = vmatprep.subr.mxu0 0.0
        %1781 = vmatpush2.msra.mxu0 0.0
        %1782 = vmatprep.subr.mxu0 0.0
        %1783 = vmatpush2.msra.mxu0 0.0
        %1784 = vmatprep.subr.mxu0 0.0
        %1785 = vmatpush2.msra.mxu0 0.0
        %1786 = vmatprep.subr.mxu0 0.0
        %1787 = vmatpush2.msra.mxu0 0.0
        %1788 = vmatprep.subr.mxu0 0.0
        %1789 = vmatpush2.msra.mxu0 0.0
        %1790 = vmatprep.subr.mxu0 0.0
        %1791 = vmatpush2.msra.mxu0 0.0
        %1792 = vmatprep.subr.mxu0 0.0
        %1793 = vmatpush2.msra.mxu0 0.0
        %1794 = vmatprep.subr.mxu0 0.0
        %1795 = vmatpush2.msra.mxu0 0.0
        %1796 = vmatprep.subr.mxu0 0.0
        %1797 = vmatpush2.msra.mxu0 0.0
        %1798 = vmatprep.subr.mxu0 0.0
        %1799 = vmatpush2.msra.mxu0 0.0
        %1800 = vmatprep.subr.mxu0 0.0
        %1801 = vmatpush2.msra.mxu0 0.0
        %1802 = vmatprep.subr.mxu0 0.0
        %1803 = vmatpush2.msra.mxu0 0.0
        %1804 = vmatprep.subr.mxu0 0.0
        %1805 = vmatpush2.msra.mxu0 0.0
        %1806 = vmatprep.mubr.f32.mxu0 0.0
        %1807 = vmatmul.mubr.f32.gmra.mxu0 %v1670
        %v1808 = vpop.f32.mrf.mxu0
        %v1809 = vadd.f32 0.0, %v1808
        %v1810 = vpop.f32.mrf.mxu0
        %1811 = vdwg.mxu0
        %v1812 = vld [vmem:[%s274] sm:$0xff]
        %v1813 = vld [vmem:[%s274 + $0x8] sm:$0xff]
        %v1814 = vld [vmem:[%s274 + $0x10] sm:$0xff]
        %v1815 = vadd.f32 %v1667, %v1592
        %v1816 = vxor.u32 %v1815, 2147483648
        %v1817 = vmul.f32 %v1816, 1.442695
        %v1818 = vpow.pop %v1817
        %v1819 = vadd.f32 %v1818, 1.0
        %v1820 = vrcp.pop %v1819
        %v1821 = vmul.f32 1.0, %v1820
        %v1822 = vadd.f32 %v1668, %v1594
        %v1823 = vxor.u32 %v1822, 2147483648
        %v1824 = vmul.f32 %v1823, 1.442695
        %v1825 = vpow.pop %v1824
        %v1826 = vadd.f32 %v1825, 1.0
        %v1827 = vrcp.pop %v1826
        %v1828 = vmul.f32 1.0, %v1827
        %v1829 = vadd.f32 %v1663, %v429
        %v1830 = vmul.f32 %v1821, %v1829
        %v1831 = vadd.f32 %v1669, %v1830
        %v1832 = vtanh.pop %v1831
        %v1833 = vsub.f32 1.0, %v1828
        %v1834 = vmul.f32 %v1833, %v1832
        %v1835 = vmul.f32 %v1828, %v1524
        %v1836 = vadd.f32 %v1834, %v1835
        %s1837 = sadd.s32 %s753, 3
        %p1838 = scmp.lt.s32.totalorder %s1837, 10
        %s1839 = scalar_select %p1838, 1, 0
        %s1840 = scvt.s32.f32 %s1839
        %v1841 = vstv %s1840
        %v1842 = vmul.f32 %v1841, %v1836
        %s1843 = ssub.f32 1.0, %s1840
        %v1844 = vstv %s1843
        %v1845 = vmul.f32 %v1844, %v1524
        %v1846 = vadd.f32 %v1842, %v1845
        %1847 = vst [vmem:[#allocation2] sm:$0xff] %v1846
        %s1848 = scalar_lea.vmem %s307, 24 [#allocation9]
        %1849 = vst [vmem:[%s1848] sm:$0xff] %v1846
        %v1850 = vadd.f32 %v1812, %v1738
        %v1851 = vxor.u32 %v1850, 2147483648
        %v1852 = vmul.f32 %v1851, 1.442695
        %v1853 = vpow.pop %v1852
        %v1854 = vadd.f32 %v1853, 1.0
        %v1855 = vrcp.pop %v1854
        %v1856 = vmul.f32 1.0, %v1855
        %v1857 = vadd.f32 %v1813, %v1740
        %v1858 = vxor.u32 %v1857, 2147483648
        %v1859 = vmul.f32 %v1858, 1.442695
        %v1860 = vpow.pop %v1859
        %v1861 = vadd.f32 %v1860, 1.0
        %v1862 = vrcp.pop %v1861
        %v1863 = vmul.f32 1.0, %v1862
        %v1864 = vadd.f32 %v1809, %v437
        %v1865 = vmul.f32 %v1856, %v1864
        %v1866 = vadd.f32 %v1814, %v1865
        %v1867 = vtanh.pop %v1866
        %v1868 = vsub.f32 1.0, %v1863
        %v1869 = vmul.f32 %v1868, %v1867
        %v1870 = vmul.f32 %v1863, %v1670
        %v1871 = vadd.f32 %v1869, %v1870
        %s1872 = ssub.s32 8, %s753
        %p1873 = scmp.lt.s32.totalorder %s1872, 10
        %s1874 = scalar_select %p1873, 1, 0
        %s1875 = scvt.s32.f32 %s1874
        %v1876 = vstv %s1875
        %v1877 = vmul.f32 %v1876, %v1871
        %s1878 = ssub.f32 1.0, %s1875
        %v1879 = vstv %s1878
        %v1880 = vmul.f32 %v1879, %v1670
        %v1881 = vadd.f32 %v1877, %v1880
        %1882 = vst [vmem:[%s584] sm:$0xff] %v1881
        %1883 = vst [vmem:[%s314] sm:$0xff] %v1881
        %s1884 = sand.u32 %s133, 1
        %s1885 = scalar_lea.sflag [#allocation5], %s1884
        %s1886 = sand.u32 %s133, 1
        %s1887 = smul.addr %s1886, 32
        %s1888 = scalar_lea.vmem [#allocation9], %s1887
        %s1889 = sand.u32 %s161, 1
        %s1890 = scalar_lea.sflag [#allocation11], %s1889
        %s1891 = sand.u32 %s161, 1
        %s1892 = smul.addr %s1891, 32
        %s1893 = scalar_lea.vmem [#allocation10], %s1892
        // Predicated region
        $region53: #{tpu_custom_call.1} parent=35 // pred_check
          %p1894 = pneg %p143
        $region54: #{tpu_custom_call.1} parent=35 // pred_check_branch
          %1896 = sbr.rel (%p1894) target = $region56
        $region55: #{tpu_custom_call.1} parent=35 // pred_region
          %s1897 = smul.u32 4, %s29
          %s1899 = ssub.s32 512, 512
          %1900 = vsyncadd %s1885, %s1899
          %s1901 = smul.addr %s1897, 128
          %s1902 = scalar_lea.hbm %s4, %s1901
          %s1903 = sshll.u32 %s1888, 4
          %s1904 = int_to_ptr.vmem [resolvable:$true] %s1903
          %1909 = dma.vmem_to_hbm [thread:$0]  %s1904, 512, %s1902, %s1885, 128, 128, 8
        $region56: #{tpu_custom_call.1} parent=35 // pred_fallthru
          _
        // Predicated region
        $region57: #{tpu_custom_call.1} parent=35 // pred_check
          %p1910 = pneg %p171
        $region58: #{tpu_custom_call.1} parent=35 // pred_check_branch
          %1912 = sbr.rel (%p1910) target = $region60
        $region59: #{tpu_custom_call.1} parent=35 // pred_region
          %s1913 = ssub.s32 2, %s29
          %s1914 = smul.u32 4, %s1913
          %s1916 = ssub.s32 512, 512
          %1917 = vsyncadd %s1890, %s1916
          %s1918 = smul.addr %s1914, 128
          %s1919 = scalar_lea.hbm %s5, %s1918
          %s1920 = sshll.u32 %s1893, 4
          %s1921 = int_to_ptr.vmem [resolvable:$true] %s1920
          %1926 = dma.vmem_to_hbm [thread:$0]  %s1921, 512, %s1919, %s1890, 128, 128, 8
        $region60: #{tpu_custom_call.1} parent=35 // pred_fallthru
          _
      $region36: #{tpu_custom_call.1} parent=5 // pred_fallthru
        _
      %p1927 = scmp.le.s32.totalorder 2, %s24
      // Predicated region
      $region61: #{tpu_custom_call.1} parent=5 // pred_check
        %p1928 = pneg %p1927
      $region62: #{tpu_custom_call.1} parent=5 // pred_check_branch
        %1930 = sbr.rel (%p1928) target = $region64
      $region63: #{tpu_custom_call.1} parent=5 // pred_region
        %s1931 = ssub.s32 %s24, 2
        // Predicated region
        $region65: #{tpu_custom_call.1} parent=63 // pred_check
          %p1932 = pneg %p149
        $region66: #{tpu_custom_call.1} parent=63 // pred_check_branch
          %1934 = sbr.rel (%p1932) target = $region68
        $region67: #{tpu_custom_call.1} parent=63 // pred_region
          %s1935 = sand.u32 %s134, 1
          %s1936 = scalar_lea.sflag [#allocation5], %s1935
          %s1937 = sand.u32 %s134, 1
          %s1938 = smul.addr %s1937, 32
          %s1939 = scalar_lea.vmem [#allocation9], %s1938
          %1940 = dma.done %s1936, 512
        $region68: #{tpu_custom_call.1} parent=63 // pred_fallthru
          _
        // Predicated region
        $region69: #{tpu_custom_call.1} parent=63 // pred_check
          %p1941 = pneg %p177
        $region70: #{tpu_custom_call.1} parent=63 // pred_check_branch
          %1943 = sbr.rel (%p1941) target = $region72
        $region71: #{tpu_custom_call.1} parent=63 // pred_region
          %s1944 = sand.u32 %s162, 1
          %s1945 = scalar_lea.sflag [#allocation11], %s1944
          %s1946 = sand.u32 %s162, 1
          %s1947 = smul.addr %s1946, 32
          %s1948 = scalar_lea.vmem [#allocation10], %s1947
          %1949 = dma.done %s1945, 512
        $region72: #{tpu_custom_call.1} parent=63 // pred_fallthru
          _
      $region64: #{tpu_custom_call.1} parent=5 // pred_fallthru
        _
    $region6: #{tpu_custom_call.1} parent=1 // loop_footer
      %s28 = sadd.s32 1, %s24
    $region7: #{tpu_custom_call.1} parent=1 // loop_footer_branch
      %23 = sbr.rel target = $region3
    $region8: #{tpu_custom_call.1} parent=1 // loop_exit
      _
    %1950 = vsyncpa [#allocation4], 1
    %s1951 = scalar_lea.sflag [#allocation4], 1
    %1952 = vsyncpa %s1951, 1
    %1953 = vsyncpa [#allocation7], 1
    %s1954 = scalar_lea.sflag [#allocation7], 1
    %1955 = vsyncpa %s1954, 1
    %1956 = vsyncpa [#allocation5], 1
    %s1957 = scalar_lea.sflag [#allocation5], 1
    %1958 = vsyncpa %s1957, 1
    %1959 = vsyncpa [#allocation11], 1
    %s1960 = scalar_lea.sflag [#allocation11], 1
    %1961 = vsyncpa %s1960, 1

</llo_original>
